<compile_context>
chip_gen: v5e
topology: v5e:2x2
jax: 0.10.0
libtpu: 0.0.40
codegen_flags: <defaults>
</compile_context>

<pallas_src>
import functools

import jax
import jax.numpy as jnp
from jax.experimental import pallas as pl
from jax.experimental.pallas import tpu as pltpu

LANE = 128       # channel padding multiple (lane dim)
SUBLANE = 16     # W padding multiple (sublane dim; 16 keeps bf16-packed slices aligned)


def _round_up(n, m):
    return ((n + m - 1) // m) * m


# ---------------------------------------------------------------------------
# Fused Pallas kernel:
#   conv1(1x1)+bn1+relu -> conv2(3x3, pad=1, stride=1)+bn2+relu -> conv3(1x1)+bn3
# operating on one (image, row-tile) block per grid step.
# ---------------------------------------------------------------------------
def _bottleneck_kernel(x_ref, w1_ref, b1_ref, w2_ref, b2_ref, w3_ref, b3_ref, o_ref,
                       *, H, W, TH):
    # x_ref : (1, 1, THp, Wp, Cinp)  NHWC row tile = TH interior rows + 2 halo rows,
    #         left 1-px zero halo + right alignment padding, channels lane-padded.
    # w1    : (Cinp, Pp)   w2: (3, 3*Pp, Pp)  (3 kx taps stacked along K)   w3: (Pp, C3p)
    # b*    : (1, C) f32 biases with BatchNorm folded in.
    # o_ref : (1, TH, W, C3p) f32
    _, _, THp, Wp, Cinp = x_ref.shape
    Pp = w1_ref.shape[1]
    C3p = w3_ref.shape[1]
    cdt = x_ref.dtype                      # MXU operand dtype (bf16 on the perf path)
    t = pl.program_id(1)

    # ---- stage 1: 1x1 conv + folded BN + ReLU over the whole (halo incl.) row tile ----
    xv = x_ref[...].reshape(THp * Wp, Cinp)
    h1 = jnp.dot(xv, w1_ref[...], preferred_element_type=jnp.float32) + b1_ref[...]
    h1 = jnp.maximum(h1, 0.0).reshape(THp, Wp, Pp)

    # Zero the 3x3 conv's halo: rows outside global 1..H and cols outside 1..W hold
    # relu(b1) after stage 1 but must contribute exactly 0 to the taps.  The iotas are
    # (THp, Wp, 1); the compare/select broadcasts over the Pp lanes (cheap mask).
    lr = jax.lax.broadcasted_iota(jnp.int32, (THp, Wp, 1), 0)
    lc = jax.lax.broadcasted_iota(jnp.int32, (THp, Wp, 1), 1)
    gr = lr + t * TH                       # global padded row index of this tile's rows
    interior = (gr >= 1) & (gr <= H) & (lc >= 1) & (lc <= W)
    h1 = jnp.where(interior, h1, 0.0).reshape(THp * Wp, Pp)

    # ---- stage 2: 3x3 conv + folded BN + ReLU ------------------------------------
    # Output column c uses padded columns c, c+1, c+2.  The column shifts are XLU
    # rolls of the flattened activation (the wrapped-around tail only ever feeds
    # output columns >= W, which are cropped before the store); the ky row taps are
    # sublane-aligned slices, so no relayout copies are materialized.
    R = THp * Wp
    sh1 = pltpu.roll(h1, R - 1, axis=0)    # sh1[j] = h1[j + 1]
    sh2 = pltpu.roll(h1, R - 2, axis=0)    # sh2[j] = h1[j + 2]
    h1cat = jnp.concatenate([h1, sh1, sh2], axis=1).astype(cdt)   # (R, 3*Pp)

    acc = jnp.zeros((TH * Wp, Pp), jnp.float32)
    for ky in range(3):                    # 3 deep-K matmuls instead of 9 shallow ones
        acc += jnp.dot(h1cat[ky * Wp:(ky + TH) * Wp, :], w2_ref[ky],
                       preferred_element_type=jnp.float32)
    h2 = jnp.maximum(acc + b2_ref[...], 0.0).astype(cdt)

    # ---- stage 3: 1x1 conv + folded BN --------------------------------------------
    out = jnp.dot(h2, w3_ref[...], preferred_element_type=jnp.float32) + b3_ref[...]
    out = out.reshape(TH, Wp, C3p)[:, :W, :]          # aligned crop (starts at col 0)
    o_ref[...] = out.reshape(1, TH, W, C3p).astype(o_ref.dtype)


# ---------------------------------------------------------------------------
# Wrapper: BN folding, padding, halo row-tiling, pallas_call
# ---------------------------------------------------------------------------
def bottleneck_forward(x_nchw, params, stride=1, downsample=None, *,
                       compute_dtype=jnp.bfloat16, tile_h=8):
    # TODO(synk): stride>1 and the optional downsample submodule are not implemented.
    assert downsample is None and stride == 1
    eps = 1e-5
    N, Cin, H, W = x_nchw.shape
    P = params["w1"].shape[0]
    C3 = params["w3"].shape[0]

    # Fold eval-mode BatchNorm into conv weights/biases:  y = (x@w + b)*s + t.
    def fold(bn):
        s = bn["gamma"] / jnp.sqrt(bn["var"] + eps)
        return s, bn["beta"] - bn["mean"] * s

    s1, t1 = fold(params["bn1"])
    s2, t2 = fold(params["bn2"])
    s3, t3 = fold(params["bn3"])

    w1 = params["w1"][:, :, 0, 0].T * s1[None, :]                 # (Cin, P)
    b1 = params["b1"] * s1 + t1
    w2 = jnp.transpose(params["w2"], (2, 3, 1, 0)) * s2           # (ky, kx, ci, co)
    b2 = params["b2"] * s2 + t2
    w3 = params["w3"][:, :, 0, 0].T * s3[None, :]                 # (P, 4P)
    b3 = params["b3"] * s3 + t3

    # Row-tile size: largest divisor of H that is <= tile_h.
    TH = 1
    for d in range(1, min(H, tile_h) + 1):
        if H % d == 0:
            TH = d
    T = H // TH
    THp = TH + 2

    # Lane-dense channel padding; sublane-friendly W padding (incl. left 3x3 halo).
    Cinp = _round_up(Cin, LANE)
    Pp = _round_up(P, LANE)
    C3p = _round_up(C3, LANE)
    Wp = _round_up(W + 2, SUBLANE)

    # Weights/biases: pad, stack the 3 kx taps along K, cast MXU operands once.
    w1p = jnp.pad(w1, ((0, Cinp - Cin), (0, Pp - P))).astype(compute_dtype)
    w2p = jnp.pad(w2, ((0, 0), (0, 0), (0, Pp - P), (0, Pp - P)))
    w2cat = w2p.reshape(3, 3 * Pp, Pp).astype(compute_dtype)      # (ky, kx*ci, co)
    w3p = jnp.pad(w3, ((0, Pp - P), (0, C3p - C3))).astype(compute_dtype)
    b1p = jnp.pad(b1, (0, Pp - P))[None, :].astype(jnp.float32)
    b2p = jnp.pad(b2, (0, Pp - P))[None, :].astype(jnp.float32)
    b3p = jnp.pad(b3, (0, C3p - C3))[None, :].astype(jnp.float32)

    # NHWC + zero halo (top/left 1px) + alignment padding, cast once for the MXU, and
    # materialize overlapping row tiles (tile t holds padded rows t*TH .. t*TH+TH+1).
    # TODO(synk): keep NHWC end-to-end across the network to drop these layout passes.
    x_nhwc = jnp.transpose(x_nchw, (0, 2, 3, 1))
    xp = jnp.pad(x_nhwc, ((0, 0), (1, 1), (1, Wp - W - 1), (0, Cinp - Cin)))
    xp = xp.astype(compute_dtype)
    x_tiles = jnp.stack([xp[:, t * TH:t * TH + THp] for t in range(T)], axis=1)

    kernel = functools.partial(_bottleneck_kernel, H=H, W=W, TH=TH)
    out4d = pl.pallas_call(
        kernel,
        out_shape=jax.ShapeDtypeStruct((N, H, W, C3p), jnp.float32),
        grid=(N, T),
        in_specs=[
            pl.BlockSpec((1, 1, THp, Wp, Cinp), lambda n, t: (n, t, 0, 0, 0)),
            # TODO(synk): mark these grid-invariant specs pipeline_mode=pl.Buffered(1)
            # to reclaim VMEM at large widths (default double-buffers constants).
            pl.BlockSpec((Cinp, Pp), lambda n, t: (0, 0)),
            pl.BlockSpec((1, Pp), lambda n, t: (0, 0)),
            pl.BlockSpec((3, 3 * Pp, Pp), lambda n, t: (0, 0, 0)),
            pl.BlockSpec((1, Pp), lambda n, t: (0, 0)),
            pl.BlockSpec((Pp, C3p), lambda n, t: (0, 0)),
            pl.BlockSpec((1, C3p), lambda n, t: (0, 0)),
        ],
        out_specs=pl.BlockSpec((1, TH, W, C3p), lambda n, t: (n, t, 0, 0)),
        compiler_params=pltpu.CompilerParams(
            dimension_semantics=("parallel", "parallel"),
            vmem_limit_bytes=48 * 1024 * 1024,
        ),
    )(x_tiles, w1p, b1p, w2cat, b2p, w3p, b3p)

    out_nchw = jnp.transpose(out4d[..., :C3], (0, 3, 1, 2))
    residual = x_nchw
    return out_nchw, residual


# ---------------------------------------------------------------------------
# Parameters (deterministic synthetic init; shapes match the nn.Module)
# ---------------------------------------------------------------------------
def init_bottleneck_params(key, inplanes, planes):
    exp = 4
    ks = jax.random.split(key, 9)

    def conv_w(k, co, ci, kh, kw):
        fan = ci * kh * kw
        return jax.random.normal(k, (co, ci, kh, kw), jnp.float32) / jnp.sqrt(fan)

    def bn(k, c):
        k1, k2, k3, k4 = jax.random.split(k, 4)
        return dict(gamma=1.0 + 0.1 * jax.random.normal(k1, (c,), jnp.float32),
                    beta=0.1 * jax.random.normal(k2, (c,), jnp.float32),
                    mean=0.1 * jax.random.normal(k3, (c,), jnp.float32),
                    var=jnp.abs(jax.random.normal(k4, (c,), jnp.float32)) + 0.5)

    return dict(
        w1=conv_w(ks[0], planes, inplanes, 1, 1),
        b1=0.01 * jax.random.normal(ks[1], (planes,), jnp.float32),
        w2=conv_w(ks[2], planes, planes, 3, 3),
        b2=0.01 * jax.random.normal(ks[3], (planes,), jnp.float32),
        w3=conv_w(ks[4], planes * exp, planes, 1, 1),
        b3=0.01 * jax.random.normal(ks[5], (planes * exp,), jnp.float32),
        bn1=bn(ks[6], planes),
        bn2=bn(ks[7], planes),
        bn3=bn(ks[8], planes * exp),
    )


# ---------------------------------------------------------------------------
# Pure-JAX reference (in-script correctness check only)
# ---------------------------------------------------------------------------
def _reference(x, params, stride=1):
    eps = 1e-5

    def conv(x, w, b, stride=1, pad=0):
        y = jax.lax.conv_general_dilated(x, w, (stride, stride),
                                         [(pad, pad), (pad, pad)],
                                         dimension_numbers=("NCHW", "OIHW", "NCHW"))
        return y + b[None, :, None, None]

    def bn(x, p):
        s = p["gamma"] / jnp.sqrt(p["var"] + eps)
        return x * s[None, :, None, None] + (p["beta"] - p["mean"] * s)[None, :, None, None]

    h = jax.nn.relu(bn(conv(x, params["w1"], params["b1"]), params["bn1"]))
    h = jax.nn.relu(bn(conv(h, params["w2"], params["b2"], stride, 1), params["bn2"]))
    h = bn(conv(h, params["w3"], params["b3"]), params["bn3"])
    return h, x


if __name__ == "__main__":
    key = jax.random.PRNGKey(0)
    k_x, k_p = jax.random.split(key)

    N, inplanes, planes, H = 2, 16, 8, 16          # small shapes; out channels = 4*planes
    x = jax.random.normal(k_x, (N, inplanes, H, H), jnp.float32)
    params = init_bottleneck_params(k_p, inplanes, planes)

    ref_out, ref_res = _reference(x, params, stride=1)

    # Exact-math path (f32 MXU operands): tight elementwise check of the fused algorithm.
    out32, res32 = jax.jit(
        lambda v: bottleneck_forward(v, params, compute_dtype=jnp.float32))(x)
    jax.block_until_ready((out32, res32))
    assert out32.shape == (N, planes * 4, H, H), out32.shape
    assert res32.shape == x.shape
    assert jnp.allclose(out32, ref_out, atol=1e-4, rtol=1e-4), \
        float(jnp.max(jnp.abs(out32 - ref_out)))
    assert jnp.allclose(res32, ref_res)

    # Performance path (bf16 MXU operands, f32 accumulation + f32 epilogue).
    out16, res16 = jax.jit(lambda v: bottleneck_forward(v, params))(x)
    jax.block_until_ready((out16, res16))
    assert out16.shape == (N, planes * 4, H, H), out16.shape
    rel = jnp.linalg.norm(out16 - ref_out) / jnp.linalg.norm(ref_out)
    assert float(rel) < 2e-2, float(rel)           # bf16 operand tolerance
    assert jnp.allclose(res16, ref_res)

    print("KERNEL_OK")
</pallas_src>

<mosaic_0001>
module attributes {stable_mosaic.version = 11 : i64} {
  func.func @_bottleneck_kernel(%arg0: i32, %arg1: i32, %arg2: memref<1x1x10x32x128xf32, #tpu.memory_space<vmem>>, %arg3: memref<128x128xf32, #tpu.memory_space<vmem>>, %arg4: memref<1x128xf32, #tpu.memory_space<vmem>>, %arg5: memref<3x384x128xf32, #tpu.memory_space<vmem>>, %arg6: memref<1x128xf32, #tpu.memory_space<vmem>>, %arg7: memref<128x128xf32, #tpu.memory_space<vmem>>, %arg8: memref<1x128xf32, #tpu.memory_space<vmem>>, %arg9: memref<1x8x16x128xf32, #tpu.memory_space<vmem>>) attributes {dimension_semantics = [#tpu.dimension_semantics<parallel>, #tpu.dimension_semantics<parallel>], iteration_bounds = array<i64: 2, 2>, scalar_prefetch = 0 : i64, scratch_operands = 0 : i64, tpu.core_type = #tpu.core_type<tc>, window_params = [{transform_indices = @transform_0, window_bounds = array<i64: 1, 1, 10, 32, 128>}, {pipeline_mode = #tpu.pipeline_mode<synchronous>, transform_indices = @transform_1, window_bounds = array<i64: 128, 128>}, {pipeline_mode = #tpu.pipeline_mode<synchronous>, transform_indices = @transform_2, window_bounds = array<i64: 1, 128>}, {pipeline_mode = #tpu.pipeline_mode<synchronous>, transform_indices = @transform_3, window_bounds = array<i64: 3, 384, 128>}, {pipeline_mode = #tpu.pipeline_mode<synchronous>, transform_indices = @transform_4, window_bounds = array<i64: 1, 128>}, {pipeline_mode = #tpu.pipeline_mode<synchronous>, transform_indices = @transform_5, window_bounds = array<i64: 128, 128>}, {pipeline_mode = #tpu.pipeline_mode<synchronous>, transform_indices = @transform_6, window_bounds = array<i64: 1, 128>}, {transform_indices = @transform_7, window_bounds = array<i64: 1, 8, 16, 128>}]} {
    %c0 = arith.constant 0 : index
    %c0_0 = arith.constant 0 : index
    %c0_1 = arith.constant 0 : index
    %c0_2 = arith.constant 0 : index
    %c0_3 = arith.constant 0 : index
    %0 = vector.load %arg2[%c0, %c0_0, %c0_1, %c0_2, %c0_3] : memref<1x1x10x32x128xf32, #tpu.memory_space<vmem>>, vector<1x1x10x32x128xf32>
    %1 = vector.shape_cast %0 : vector<1x1x10x32x128xf32> to vector<320x128xf32>
    %c0_4 = arith.constant 0 : index
    %c0_5 = arith.constant 0 : index
    %2 = vector.load %arg3[%c0_4, %c0_5] : memref<128x128xf32, #tpu.memory_space<vmem>>, vector<128x128xf32>
    %cst = arith.constant dense<0.000000e+00> : vector<320x128xf32>
    %3 = tpu.matmul %1, %2, %cst {dimension_numbers = #tpu.dot_dimension_numbers<[1], [0], [0], [1], [0, 0, 1, 1], [], []>} : vector<320x128xf32>, vector<128x128xf32>, vector<320x128xf32> -> vector<320x128xf32>
    %c0_6 = arith.constant 0 : index
    %c0_7 = arith.constant 0 : index
    %4 = vector.load %arg4[%c0_6, %c0_7] : memref<1x128xf32, #tpu.memory_space<vmem>>, vector<1x128xf32>
    %5 = vector.broadcast %4 : vector<1x128xf32> to vector<320x128xf32>
    %6 = arith.addf %3, %5 : vector<320x128xf32>
    %cst_8 = arith.constant 0.000000e+00 : f32
    %7 = vector.broadcast %cst_8 : f32 to vector<320x128xf32>
    %8 = arith.maximumf %6, %7 : vector<320x128xf32>
    %9 = vector.shape_cast %8 : vector<320x128xf32> to vector<10x32x128xf32>
    %10 = tpu.iota {dimensions = array<i32: 0>} : vector<10x32x1xi32>
    %11 = tpu.iota {dimensions = array<i32: 1>} : vector<10x32x1xi32>
    %c8_i32 = arith.constant 8 : i32
    %12 = arith.muli %arg1, %c8_i32 : i32
    %13 = vector.broadcast %12 : i32 to vector<10x32x1xi32>
    %14 = arith.addi %10, %13 : vector<10x32x1xi32>
    %c1_i32 = arith.constant 1 : i32
    %15 = vector.broadcast %c1_i32 : i32 to vector<10x32x1xi32>
    %16 = arith.cmpi sge, %14, %15 : vector<10x32x1xi32>
    %c16_i32 = arith.constant 16 : i32
    %17 = vector.broadcast %c16_i32 : i32 to vector<10x32x1xi32>
    %18 = arith.cmpi sle, %14, %17 : vector<10x32x1xi32>
    %19 = arith.andi %16, %18 : vector<10x32x1xi1>
    %c1_i32_9 = arith.constant 1 : i32
    %20 = vector.broadcast %c1_i32_9 : i32 to vector<10x32x1xi32>
    %21 = arith.cmpi sge, %11, %20 : vector<10x32x1xi32>
    %22 = arith.andi %19, %21 : vector<10x32x1xi1>
    %c16_i32_10 = arith.constant 16 : i32
    %23 = vector.broadcast %c16_i32_10 : i32 to vector<10x32x1xi32>
    %24 = arith.cmpi sle, %11, %23 : vector<10x32x1xi32>
    %25 = arith.andi %22, %24 : vector<10x32x1xi1>
    %cst_11 = arith.constant 0.000000e+00 : f32
    %26 = vector.shape_cast %25 : vector<10x32x1xi1> to vector<10x32x1xi1>
    %27 = vector.broadcast %26 : vector<10x32x1xi1> to vector<10x32x128xi1>
    %28 = vector.broadcast %cst_11 : f32 to vector<10x32x128xf32>
    %29 = arith.select %27, %9, %28 : vector<10x32x128xi1>, vector<10x32x128xf32>
    %30 = vector.shape_cast %29 : vector<10x32x128xf32> to vector<320x128xf32>
    %c319_i32 = arith.constant 319 : i32
    %31 = tpu.dynamic_rotate %30 by %c319_i32 dim 0 : vector<320x128xf32>, i32 -> vector<320x128xf32>
    %c318_i32 = arith.constant 318 : i32
    %32 = tpu.dynamic_rotate %30 by %c318_i32 dim 0 : vector<320x128xf32>, i32 -> vector<320x128xf32>
    %33 = tpu.concatenate %30, %31, %32 in 1 : vector<320x128xf32>, vector<320x128xf32>, vector<320x128xf32> -> vector<320x384xf32>
    %cst_12 = arith.constant 0.000000e+00 : f32
    %34 = vector.broadcast %cst_12 : f32 to vector<256x128xf32>
    %35 = vector.extract_strided_slice %33 {offsets = [0, 0], sizes = [256, 384], strides = [1, 1]} : vector<320x384xf32> to vector<256x384xf32>
    %c0_13 = arith.constant 0 : index
    %c0_14 = arith.constant 0 : index
    %c0_15 = arith.constant 0 : index
    %36 = vector.load %arg5[%c0_13, %c0_14, %c0_15] : memref<3x384x128xf32, #tpu.memory_space<vmem>>, vector<1x384x128xf32>
    %37 = vector.shape_cast %36 : vector<1x384x128xf32> to vector<384x128xf32>
    %cst_16 = arith.constant dense<0.000000e+00> : vector<256x128xf32>
    %38 = tpu.matmul %35, %37, %cst_16 {dimension_numbers = #tpu.dot_dimension_numbers<[1], [0], [0], [1], [0, 0, 1, 1], [], []>} : vector<256x384xf32>, vector<384x128xf32>, vector<256x128xf32> -> vector<256x128xf32>
    %39 = arith.addf %34, %38 : vector<256x128xf32>
    %40 = vector.extract_strided_slice %33 {offsets = [32, 0], sizes = [256, 384], strides = [1, 1]} : vector<320x384xf32> to vector<256x384xf32>
    %c1 = arith.constant 1 : index
    %c0_17 = arith.constant 0 : index
    %c0_18 = arith.constant 0 : index
    %41 = vector.load %arg5[%c1, %c0_17, %c0_18] : memref<3x384x128xf32, #tpu.memory_space<vmem>>, vector<1x384x128xf32>
    %42 = vector.shape_cast %41 : vector<1x384x128xf32> to vector<384x128xf32>
    %cst_19 = arith.constant dense<0.000000e+00> : vector<256x128xf32>
    %43 = tpu.matmul %40, %42, %cst_19 {dimension_numbers = #tpu.dot_dimension_numbers<[1], [0], [0], [1], [0, 0, 1, 1], [], []>} : vector<256x384xf32>, vector<384x128xf32>, vector<256x128xf32> -> vector<256x128xf32>
    %44 = arith.addf %39, %43 : vector<256x128xf32>
    %45 = vector.extract_strided_slice %33 {offsets = [64, 0], sizes = [256, 384], strides = [1, 1]} : vector<320x384xf32> to vector<256x384xf32>
    %c2 = arith.constant 2 : index
    %c0_20 = arith.constant 0 : index
    %c0_21 = arith.constant 0 : index
    %46 = vector.load %arg5[%c2, %c0_20, %c0_21] : memref<3x384x128xf32, #tpu.memory_space<vmem>>, vector<1x384x128xf32>
    %47 = vector.shape_cast %46 : vector<1x384x128xf32> to vector<384x128xf32>
    %cst_22 = arith.constant dense<0.000000e+00> : vector<256x128xf32>
    %48 = tpu.matmul %45, %47, %cst_22 {dimension_numbers = #tpu.dot_dimension_numbers<[1], [0], [0], [1], [0, 0, 1, 1], [], []>} : vector<256x384xf32>, vector<384x128xf32>, vector<256x128xf32> -> vector<256x128xf32>
    %49 = arith.addf %44, %48 : vector<256x128xf32>
    %c0_23 = arith.constant 0 : index
    %c0_24 = arith.constant 0 : index
    %50 = vector.load %arg6[%c0_23, %c0_24] : memref<1x128xf32, #tpu.memory_space<vmem>>, vector<1x128xf32>
    %51 = vector.broadcast %50 : vector<1x128xf32> to vector<256x128xf32>
    %52 = arith.addf %49, %51 : vector<256x128xf32>
    %cst_25 = arith.constant 0.000000e+00 : f32
    %53 = vector.broadcast %cst_25 : f32 to vector<256x128xf32>
    %54 = arith.maximumf %52, %53 : vector<256x128xf32>
    %c0_26 = arith.constant 0 : index
    %c0_27 = arith.constant 0 : index
    %55 = vector.load %arg7[%c0_26, %c0_27] : memref<128x128xf32, #tpu.memory_space<vmem>>, vector<128x128xf32>
    %cst_28 = arith.constant dense<0.000000e+00> : vector<256x128xf32>
    %56 = tpu.matmul %54, %55, %cst_28 {dimension_numbers = #tpu.dot_dimension_numbers<[1], [0], [0], [1], [0, 0, 1, 1], [], []>} : vector<256x128xf32>, vector<128x128xf32>, vector<256x128xf32> -> vector<256x128xf32>
    %c0_29 = arith.constant 0 : index
    %c0_30 = arith.constant 0 : index
    %57 = vector.load %arg8[%c0_29, %c0_30] : memref<1x128xf32, #tpu.memory_space<vmem>>, vector<1x128xf32>
    %58 = vector.broadcast %57 : vector<1x128xf32> to vector<256x128xf32>
    %59 = arith.addf %56, %58 : vector<256x128xf32>
    %60 = vector.shape_cast %59 : vector<256x128xf32> to vector<8x32x128xf32>
    %61 = vector.extract_strided_slice %60 {offsets = [0, 0, 0], sizes = [8, 16, 128], strides = [1, 1, 1]} : vector<8x32x128xf32> to vector<8x16x128xf32>
    %62 = vector.shape_cast %61 : vector<8x16x128xf32> to vector<1x8x16x128xf32>
    %c0_31 = arith.constant 0 : index
    %c0_32 = arith.constant 0 : index
    %c0_33 = arith.constant 0 : index
    %c0_34 = arith.constant 0 : index
    %63 = vector.load %arg9[%c0_31, %c0_32, %c0_33, %c0_34] : memref<1x8x16x128xf32, #tpu.memory_space<vmem>>, vector<1x8x16x128xf32>
    tpu.vector_store %arg9[%c0_31, %c0_32, %c0_33, %c0_34], %62 {strides = array<i32>} : memref<1x8x16x128xf32, #tpu.memory_space<vmem>>, vector<1x8x16x128xf32>,
    return
  }
  func.func @transform_0(%arg0: i32, %arg1: i32) -> (i32, i32, i32, i32, i32) {
    %c0_i32 = arith.constant 0 : i32
    %c0_i32_0 = arith.constant 0 : i32
    %c0_i32_1 = arith.constant 0 : i32
    %c0_i32_2 = arith.constant 0 : i32
    return %arg0, %arg1, %c0_i32, %c0_i32_0, %c0_i32_1 : i32, i32, i32, i32, i32
  }
  func.func @transform_1(%arg0: i32, %arg1: i32) -> (i32, i32) {
    %c0_i32 = arith.constant 0 : i32
    %c0_i32_0 = arith.constant 0 : i32
    %c0_i32_1 = arith.constant 0 : i32
    return %c0_i32, %c0_i32_0 : i32, i32
  }
  func.func @transform_2(%arg0: i32, %arg1: i32) -> (i32, i32) {
    %c0_i32 = arith.constant 0 : i32
    %c0_i32_0 = arith.constant 0 : i32
    %c0_i32_1 = arith.constant 0 : i32
    return %c0_i32, %c0_i32_0 : i32, i32
  }
  func.func @transform_3(%arg0: i32, %arg1: i32) -> (i32, i32, i32) {
    %c0_i32 = arith.constant 0 : i32
    %c0_i32_0 = arith.constant 0 : i32
    %c0_i32_1 = arith.constant 0 : i32
    %c0_i32_2 = arith.constant 0 : i32
    return %c0_i32, %c0_i32_0, %c0_i32_1 : i32, i32, i32
  }
  func.func @transform_4(%arg0: i32, %arg1: i32) -> (i32, i32) {
    %c0_i32 = arith.constant 0 : i32
    %c0_i32_0 = arith.constant 0 : i32
    %c0_i32_1 = arith.constant 0 : i32
    return %c0_i32, %c0_i32_0 : i32, i32
  }
  func.func @transform_5(%arg0: i32, %arg1: i32) -> (i32, i32) {
    %c0_i32 = arith.constant 0 : i32
    %c0_i32_0 = arith.constant 0 : i32
    %c0_i32_1 = arith.constant 0 : i32
    return %c0_i32, %c0_i32_0 : i32, i32
  }
  func.func @transform_6(%arg0: i32, %arg1: i32) -> (i32, i32) {
    %c0_i32 = arith.constant 0 : i32
    %c0_i32_0 = arith.constant 0 : i32
    %c0_i32_1 = arith.constant 0 : i32
    return %c0_i32, %c0_i32_0 : i32, i32
  }
  func.func @transform_7(%arg0: i32, %arg1: i32) -> (i32, i32, i32, i32) {
    %c0_i32 = arith.constant 0 : i32
    %c0_i32_0 = arith.constant 0 : i32
    %c0_i32_1 = arith.constant 0 : i32
    return %arg0, %arg1, %c0_i32, %c0_i32_0 : i32, i32, i32, i32
  }
}

</mosaic_0001>

<llo_original>
// kernel: _lambda_.1
$region0: #{_lambda_.1}
  #allocation0 [shape = 'u32[]', space=smem, size = 0x4, offset = 0x4, fixed_abs, tag = 'smem constant byte address 0x4 - core index']
  #allocation1 [shape = 'u32[72,128]{1,0:T(1,128)}', space=vmem, size = 0x9000, scoped, tag = 'internal scratch']
  %s0 = inlined_call_operand.vmem [shape: f32[2,2,10,32,128], index: 0, kind: input, shape index: {}]
  %s1 = inlined_call_operand.vmem [shape: f32[128,128], index: 1, kind: input, shape index: {}]
  %s2 = inlined_call_operand.vmem [shape: f32[1,128], index: 2, kind: input, shape index: {}]
  %s3 = inlined_call_operand.vmem [shape: f32[3,384,128], index: 3, kind: input, shape index: {}]
  %s4 = inlined_call_operand.vmem [shape: f32[1,128], index: 4, kind: input, shape index: {}]
  %s5 = inlined_call_operand.vmem [shape: f32[128,128], index: 5, kind: input, shape index: {}]
  %s6 = inlined_call_operand.vmem [shape: f32[1,128], index: 6, kind: input, shape index: {}]
  %s7 = inlined_call_operand.vmem [shape: f32[2,16,16,128], index: 7, kind: output, shape index: {}]
  %s8 = sld [smem:[#allocation0]]
  $region61: #{_lambda_.1} parent=0
    _
  %s10 = ssub.s32 1, %s8
  %s11 = scalar_select 0, %s10, %s8
  loop: start=0, step=1, limit=6
  $region2: #{_lambda_.1} parent=0 // loop_pre_header
    _
  $region3: #{_lambda_.1} parent=0 // loop_header
    %s13 = sphi 0, %s17
    %p14 = scmp.ge.s32.totalorder %s13, 6
    %s20 = sphi 0, %s32
    %s21 = sphi 0, %s28
    %s22 = sphi 0, %s20
    %s23 = sphi 0, %s21
    %s24 = sphi 0, %s22
    %s25 = sphi 0, %s23
    %s37 = sphi 0, %s39
    %s40 = sphi 0, %s37
    %s41 = sphi 0, %s40
    %s57 = sphi 0, %s41
    %s61 = sphi 0, %s61
    %s63 = sphi 0, %s61
    %s64 = sphi 0, %s63
    %s78 = sphi 0, %s64
    %s82 = sphi 0, %s82
    %s84 = sphi 0, %s82
    %s85 = sphi 0, %s84
    %s99 = sphi 0, %s85
    %s103 = sphi 0, %s103
    %s105 = sphi 0, %s103
    %s106 = sphi 0, %s105
    %s120 = sphi 0, %s106
    %s124 = sphi 0, %s124
    %s126 = sphi 0, %s124
    %s127 = sphi 0, %s126
    %s141 = sphi 0, %s127
    %s145 = sphi 0, %s145
    %s147 = sphi 0, %s145
    %s148 = sphi 0, %s147
    %s162 = sphi 0, %s148
    %s166 = sphi 0, %s166
    %s168 = sphi 0, %s166
    %s169 = sphi 0, %s168
    %s183 = sphi 0, %s169
    %s191 = sphi 0, %s193
    %s194 = sphi 0, %s191
    %s195 = sphi 0, %s194
    %s211 = sphi 0, %s195
  $region4: #{_lambda_.1} parent=0 // loop_header_branch
    %16 = sbr.rel (%p14) target = $region8
  $region5: #{_lambda_.1} parent=0 // loop_body
    %s18 = ssub.s32 %s13, 1
    %s19 = ssub.s32 %s13, 2
    %s26 = sadd.s32 1, %s21
    %p27 = scmp.ge.s32.totalorder %s26, 2
    %s28 = scalar_select %p27, 0, %s26
    %s29 = sadd.s32 1, %s20
    %s30 = scalar_select %p27, %s29, %s20
    %p31 = scmp.ge.s32.totalorder %s30, 2
    %s32 = scalar_select %p31, 0, %s30
    %s33 = ssub.s32 %s20, %s32
    %s34 = ssub.s32 %s21, %s28
    %s35 = sor.u32 %s33, %s34
    %p36 = scmp.eq.s32.totalorder %s35, 0
    %s38 = sadd.s32 %s37, 1
    %s39 = scalar_select %p36, %s37, %s38
    %p42 = pneg %p36
    %p43 = scmp.eq.s32.totalorder %s13, 3
    %p44 = por %p42, %p43
    %p45 = scmp.ne.s32.totalorder %s37, %s40
    %p46 = scmp.eq.s32.totalorder %s13, 0
    %p47 = por %p45, %p46
    %p48 = scmp.ne.s32.totalorder %s37, %s40
    %p49 = scmp.eq.s32.totalorder %s18, 3
    %p50 = por %p48, %p49
    %p51 = scmp.ne.s32.totalorder %s40, %s41
    %p52 = scmp.eq.s32.totalorder %s18, 0
    %p53 = por %p51, %p52
    %p54 = scmp.ne.s32.totalorder %s40, %s41
    %p55 = scmp.eq.s32.totalorder %s19, 3
    %p56 = por %p54, %p55
    %p58 = scmp.ne.s32.totalorder %s41, %s57
    %p59 = scmp.eq.s32.totalorder %s19, 0
    %p60 = por %p58, %p59
    %s62 = sadd.s32 %s61, 1
    %p65 = scmp.eq.s32.totalorder %s13, 3
    %p66 = scmp.ne.s32.totalorder %s61, %s63
    %p67 = scmp.eq.s32.totalorder %s13, 0
    %p68 = por %p66, %p67
    %p69 = scmp.ne.s32.totalorder %s61, %s63
    %p70 = scmp.eq.s32.totalorder %s18, 3
    %p71 = por %p69, %p70
    %p72 = scmp.ne.s32.totalorder %s63, %s64
    %p73 = scmp.eq.s32.totalorder %s18, 0
    %p74 = por %p72, %p73
    %p75 = scmp.ne.s32.totalorder %s63, %s64
    %p76 = scmp.eq.s32.totalorder %s19, 3
    %p77 = por %p75, %p76
    %p79 = scmp.ne.s32.totalorder %s64, %s78
    %p80 = scmp.eq.s32.totalorder %s19, 0
    %p81 = por %p79, %p80
    %s83 = sadd.s32 %s82, 1
    %p86 = scmp.eq.s32.totalorder %s13, 3
    %p87 = scmp.ne.s32.totalorder %s82, %s84
    %p88 = scmp.eq.s32.totalorder %s13, 0
    %p89 = por %p87, %p88
    %p90 = scmp.ne.s32.totalorder %s82, %s84
    %p91 = scmp.eq.s32.totalorder %s18, 3
    %p92 = por %p90, %p91
    %p93 = scmp.ne.s32.totalorder %s84, %s85
    %p94 = scmp.eq.s32.totalorder %s18, 0
    %p95 = por %p93, %p94
    %p96 = scmp.ne.s32.totalorder %s84, %s85
    %p97 = scmp.eq.s32.totalorder %s19, 3
    %p98 = por %p96, %p97
    %p100 = scmp.ne.s32.totalorder %s85, %s99
    %p101 = scmp.eq.s32.totalorder %s19, 0
    %p102 = por %p100, %p101
    %s104 = sadd.s32 %s103, 1
    %p107 = scmp.eq.s32.totalorder %s13, 3
    %p108 = scmp.ne.s32.totalorder %s103, %s105
    %p109 = scmp.eq.s32.totalorder %s13, 0
    %p110 = por %p108, %p109
    %p111 = scmp.ne.s32.totalorder %s103, %s105
    %p112 = scmp.eq.s32.totalorder %s18, 3
    %p113 = por %p111, %p112
    %p114 = scmp.ne.s32.totalorder %s105, %s106
    %p115 = scmp.eq.s32.totalorder %s18, 0
    %p116 = por %p114, %p115
    %p117 = scmp.ne.s32.totalorder %s105, %s106
    %p118 = scmp.eq.s32.totalorder %s19, 3
    %p119 = por %p117, %p118
    %p121 = scmp.ne.s32.totalorder %s106, %s120
    %p122 = scmp.eq.s32.totalorder %s19, 0
    %p123 = por %p121, %p122
    %s125 = sadd.s32 %s124, 1
    %p128 = scmp.eq.s32.totalorder %s13, 3
    %p129 = scmp.ne.s32.totalorder %s124, %s126
    %p130 = scmp.eq.s32.totalorder %s13, 0
    %p131 = por %p129, %p130
    %p132 = scmp.ne.s32.totalorder %s124, %s126
    %p133 = scmp.eq.s32.totalorder %s18, 3
    %p134 = por %p132, %p133
    %p135 = scmp.ne.s32.totalorder %s126, %s127
    %p136 = scmp.eq.s32.totalorder %s18, 0
    %p137 = por %p135, %p136
    %p138 = scmp.ne.s32.totalorder %s126, %s127
    %p139 = scmp.eq.s32.totalorder %s19, 3
    %p140 = por %p138, %p139
    %p142 = scmp.ne.s32.totalorder %s127, %s141
    %p143 = scmp.eq.s32.totalorder %s19, 0
    %p144 = por %p142, %p143
    %s146 = sadd.s32 %s145, 1
    %p149 = scmp.eq.s32.totalorder %s13, 3
    %p150 = scmp.ne.s32.totalorder %s145, %s147
    %p151 = scmp.eq.s32.totalorder %s13, 0
    %p152 = por %p150, %p151
    %p153 = scmp.ne.s32.totalorder %s145, %s147
    %p154 = scmp.eq.s32.totalorder %s18, 3
    %p155 = por %p153, %p154
    %p156 = scmp.ne.s32.totalorder %s147, %s148
    %p157 = scmp.eq.s32.totalorder %s18, 0
    %p158 = por %p156, %p157
    %p159 = scmp.ne.s32.totalorder %s147, %s148
    %p160 = scmp.eq.s32.totalorder %s19, 3
    %p161 = por %p159, %p160
    %p163 = scmp.ne.s32.totalorder %s148, %s162
    %p164 = scmp.eq.s32.totalorder %s19, 0
    %p165 = por %p163, %p164
    %s167 = sadd.s32 %s166, 1
    %p170 = scmp.eq.s32.totalorder %s13, 3
    %p171 = scmp.ne.s32.totalorder %s166, %s168
    %p172 = scmp.eq.s32.totalorder %s13, 0
    %p173 = por %p171, %p172
    %p174 = scmp.ne.s32.totalorder %s166, %s168
    %p175 = scmp.eq.s32.totalorder %s18, 3
    %p176 = por %p174, %p175
    %p177 = scmp.ne.s32.totalorder %s168, %s169
    %p178 = scmp.eq.s32.totalorder %s18, 0
    %p179 = por %p177, %p178
    %p180 = scmp.ne.s32.totalorder %s168, %s169
    %p181 = scmp.eq.s32.totalorder %s19, 3
    %p182 = por %p180, %p181
    %p184 = scmp.ne.s32.totalorder %s169, %s183
    %p185 = scmp.eq.s32.totalorder %s19, 0
    %p186 = por %p184, %p185
    %s187 = ssub.s32 %s20, %s32
    %s188 = ssub.s32 %s21, %s28
    %s189 = sor.u32 %s187, %s188
    %p190 = scmp.eq.s32.totalorder %s189, 0
    %s192 = sadd.s32 %s191, 1
    %s193 = scalar_select %p190, %s191, %s192
    %p196 = pneg %p190
    %p197 = scmp.eq.s32.totalorder %s13, 3
    %p198 = por %p196, %p197
    %p199 = scmp.ne.s32.totalorder %s191, %s194
    %p200 = scmp.eq.s32.totalorder %s13, 0
    %p201 = por %p199, %p200
    %p202 = scmp.ne.s32.totalorder %s191, %s194
    %p203 = scmp.eq.s32.totalorder %s18, 3
    %p204 = por %p202, %p203
    %p205 = scmp.ne.s32.totalorder %s194, %s195
    %p206 = scmp.eq.s32.totalorder %s18, 0
    %p207 = por %p205, %p206
    %p208 = scmp.ne.s32.totalorder %s194, %s195
    %p209 = scmp.eq.s32.totalorder %s19, 3
    %p210 = por %p208, %p209
    %p212 = scmp.ne.s32.totalorder %s195, %s211
    %p213 = scmp.eq.s32.totalorder %s19, 0
    %p214 = por %p212, %p213
    %p215 = scmp.le.s32.totalorder 1, %s13
    %p216 = scmp.lt.s32.totalorder %s13, 5
    %p217 = pnand %p215, %p216
    %p218 = pneg %p217
    // Predicated region
    $region9: #{_lambda_.1} parent=5 // pred_check
      _
    $region10: #{_lambda_.1} parent=5 // pred_check_branch
      %220 = sbr.rel (%p217) target = $region12
    $region11: #{_lambda_.1} parent=5 // pred_region
      %s221 = ssub.s32 %s13, 1
      // Predicated region
      $region13: #{_lambda_.1} parent=11 // pred_check
        %p222 = pneg %p74
      $region14: #{_lambda_.1} parent=11 // pred_check_branch
        %224 = sbr.rel (%p222) target = $region16
      $region15: #{_lambda_.1} parent=11 // pred_region
        _
      $region16: #{_lambda_.1} parent=11 // pred_fallthru
        _
      // Predicated region
      $region17: #{_lambda_.1} parent=11 // pred_check
        %p225 = pneg %p95
      $region18: #{_lambda_.1} parent=11 // pred_check_branch
        %227 = sbr.rel (%p225) target = $region20
      $region19: #{_lambda_.1} parent=11 // pred_region
        _
      $region20: #{_lambda_.1} parent=11 // pred_fallthru
        _
      // Predicated region
      $region21: #{_lambda_.1} parent=11 // pred_check
        %p228 = pneg %p116
      $region22: #{_lambda_.1} parent=11 // pred_check_branch
        %230 = sbr.rel (%p228) target = $region24
      $region23: #{_lambda_.1} parent=11 // pred_region
        _
      $region24: #{_lambda_.1} parent=11 // pred_fallthru
        _
      // Predicated region
      $region25: #{_lambda_.1} parent=11 // pred_check
        %p231 = pneg %p137
      $region26: #{_lambda_.1} parent=11 // pred_check_branch
        %233 = sbr.rel (%p231) target = $region28
      $region27: #{_lambda_.1} parent=11 // pred_region
        _
      $region28: #{_lambda_.1} parent=11 // pred_fallthru
        _
      // Predicated region
      $region29: #{_lambda_.1} parent=11 // pred_check
        %p234 = pneg %p158
      $region30: #{_lambda_.1} parent=11 // pred_check_branch
        %236 = sbr.rel (%p234) target = $region32
      $region31: #{_lambda_.1} parent=11 // pred_region
        _
      $region32: #{_lambda_.1} parent=11 // pred_fallthru
        _
      // Predicated region
      $region33: #{_lambda_.1} parent=11 // pred_check
        %p237 = pneg %p179
      $region34: #{_lambda_.1} parent=11 // pred_check_branch
        %239 = sbr.rel (%p237) target = $region36
      $region35: #{_lambda_.1} parent=11 // pred_region
        _
      $region36: #{_lambda_.1} parent=11 // pred_fallthru
        _
    $region12: #{_lambda_.1} parent=5 // pred_fallthru
      _
    %p240 = scmp.lt.s32.totalorder %s13, 4
    // Predicated region
    $region37: #{_lambda_.1} parent=5 // pred_check
      %p241 = pneg %p240
    $region38: #{_lambda_.1} parent=5 // pred_check_branch
      %243 = sbr.rel (%p241) target = $region40
    $region39: #{_lambda_.1} parent=5 // pred_region
      // Predicated region
      $region41: #{_lambda_.1} parent=39 // pred_check
        %p244 = pneg %p47
      $region42: #{_lambda_.1} parent=39 // pred_check_branch
        %246 = sbr.rel (%p244) target = $region44
      $region43: #{_lambda_.1} parent=39 // pred_region
        %p247 = scmp.lt.s32.totalorder %s20, 1
        %s248 = scalar_select %p247, %s20, 1
        %p249 = scmp.lt.s32.totalorder %s21, 1
        %s250 = scalar_select %p249, %s21, 1
        %s251 = smul.addr %s250, 40
        %s252 = smul.addr %s248, 80
        %s253 = sadd.s32 %s251, %s252
        %s254 = smul.addr %s253, 8
        %s255 = scalar_lea.vmem %s0, %s254
      $region44: #{_lambda_.1} parent=39 // pred_fallthru
        _
    $region40: #{_lambda_.1} parent=5 // pred_fallthru
      _
    %p256 = scmp.le.s32.totalorder 1, %s13
    %p257 = scmp.lt.s32.totalorder %s13, 5
    %p258 = pnand %p256, %p257
    %p259 = pneg %p258
    // Predicated region
    $region45: #{_lambda_.1} parent=5 // pred_check
      _
    $region46: #{_lambda_.1} parent=5 // pred_check_branch
      %261 = sbr.rel (%p258) target = $region48
    $region47: #{_lambda_.1} parent=5 // pred_region
      %s262 = ssub.s32 %s13, 1
      %p263 = scmp.lt.s32.totalorder %s22, 1
      %s264 = scalar_select %p263, %s22, 1
      %p265 = scmp.lt.s32.totalorder %s23, 1
      %s266 = scalar_select %p265, %s23, 1
      %s267 = smul.addr %s266, 40
      %s268 = smul.addr %s264, 80
      %s269 = sadd.s32 %s267, %s268
      %s270 = smul.addr %s269, 8
      %s271 = scalar_lea.vmem %s0, %s270
      %p272 = pneg %p53
      %p273 = pneg %p50
      %p274 = pneg %p74
      %p275 = pneg %p71
      %p276 = pneg %p95
      %p277 = pneg %p92
      %p278 = pneg %p116
      %p279 = pneg %p113
      %p280 = pneg %p137
      %p281 = pneg %p134
      %p282 = pneg %p158
      %p283 = pneg %p155
      %p284 = pneg %p179
      %p285 = pneg %p176
      %p286 = pneg %p207
      %p287 = pneg %p204
      %s288 = smul.u32 8, %s23
      %p289 = scmp.lt.s32.totalorder %s22, 1
      %s290 = scalar_select %p289, %s22, 1
      %p291 = scmp.lt.s32.totalorder %s288, 15
      %s292 = scalar_select %p291, %s288, 15
      %s293 = smul.addr %s292, 2
      %s294 = smul.addr %s290, 32
      %s295 = sadd.s32 %s293, %s294
      %s296 = smul.addr %s295, 8
      %s297 = scalar_lea.vmem %s7, %s296
      %p298 = scmp.lt.s32.totalorder %s22, 1
      %s299 = scalar_select %p298, %s22, 1
      %p300 = scmp.lt.s32.totalorder %s23, 1
      %s301 = scalar_select %p300, %s23, 1
      %s302 = smul.addr %s301, 40
      %s303 = smul.addr %s299, 80
      %s304 = sadd.s32 %s302, %s303
      %s305 = smul.addr %s304, 8
      %s306 = scalar_lea.vmem %s0, %s305
      %s307 = smul.u32 8, %s23
      %p308 = scmp.lt.s32.totalorder %s22, 1
      %s309 = scalar_select %p308, %s22, 1
      %p310 = scmp.lt.s32.totalorder %s307, 15
      %s311 = scalar_select %p310, %s307, 15
      %s312 = smul.addr %s311, 2
      %s313 = smul.addr %s309, 32
      %s314 = sadd.s32 %s312, %s313
      %s315 = smul.addr %s314, 8
      %s316 = scalar_lea.vmem %s7, %s315
      %s317 = smul.u32 8, %s23
      %v318 = vld [vmem:[%s306] sm:$0xff]
      %v319 = vld [vmem:[%s306 + $0x8] sm:$0xff]
      %v320 = vld [vmem:[%s306 + $0x10] sm:$0xff]
      %v321 = vld [vmem:[%s306 + $0x18] sm:$0xff]
      %v322 = vld [vmem:[%s306 + $0x20] sm:$0xff]
      %v323 = vld [vmem:[%s306 + $0x28] sm:$0xff]
      %v324 = vld [vmem:[%s306 + $0x30] sm:$0xff]
      %v325 = vld [vmem:[%s306 + $0x38] sm:$0xff]
      %v326 = vld [vmem:[%s306 + $0x40] sm:$0xff]
      %v327 = vld [vmem:[%s306 + $0x48] sm:$0xff]
      %v328 = vld [vmem:[%s306 + $0x50] sm:$0xff]
      %v329 = vld [vmem:[%s306 + $0x58] sm:$0xff]
      %v330 = vld [vmem:[%s306 + $0x60] sm:$0xff]
      %v331 = vld [vmem:[%s306 + $0x68] sm:$0xff]
      %v332 = vld [vmem:[%s306 + $0x70] sm:$0xff]
      %v333 = vld [vmem:[%s306 + $0x78] sm:$0xff]
      %v334 = vld [vmem:[%s306 + $0x80] sm:$0xff]
      %v335 = vld [vmem:[%s306 + $0x88] sm:$0xff]
      %v336 = vld [vmem:[%s306 + $0x90] sm:$0xff]
      %v337 = vld [vmem:[%s306 + $0x98] sm:$0xff]
      %v338 = vld [vmem:[%s306 + $0xa0] sm:$0xff]
      %v339 = vld [vmem:[%s306 + $0xa8] sm:$0xff]
      %v340 = vld [vmem:[%s306 + $0xb0] sm:$0xff]
      %v341 = vld [vmem:[%s306 + $0xb8] sm:$0xff]
      %v342 = vld [vmem:[%s306 + $0xc0] sm:$0xff]
      %v343 = vld [vmem:[%s306 + $0xc8] sm:$0xff]
      %v344 = vld [vmem:[%s306 + $0xd0] sm:$0xff]
      %v345 = vld [vmem:[%s306 + $0xd8] sm:$0xff]
      %v346 = vld [vmem:[%s306 + $0xe0] sm:$0xff]
      %v347 = vld [vmem:[%s306 + $0xe8] sm:$0xff]
      %v348 = vld [vmem:[%s306 + $0xf0] sm:$0xff]
      %v349 = vld [vmem:[%s306 + $0xf8] sm:$0xff]
      %v350 = vld [vmem:[%s306 + $0x100] sm:$0xff]
      %v351 = vld [vmem:[%s306 + $0x108] sm:$0xff]
      %v352 = vld [vmem:[%s306 + $0x110] sm:$0xff]
      %v353 = vld [vmem:[%s306 + $0x118] sm:$0xff]
      %v354 = vld [vmem:[%s306 + $0x120] sm:$0xff]
      %v355 = vld [vmem:[%s306 + $0x128] sm:$0xff]
      %v356 = vld [vmem:[%s306 + $0x130] sm:$0xff]
      %v357 = vld [vmem:[%s306 + $0x138] sm:$0xff]
      %v358 = vld [vmem:[%s1] sm:$0xff]
      %v359 = vld [vmem:[%s1 + $0x8] sm:$0xff]
      %v360 = vld [vmem:[%s1 + $0x10] sm:$0xff]
      %v361 = vld [vmem:[%s1 + $0x18] sm:$0xff]
      %v362 = vld [vmem:[%s1 + $0x20] sm:$0xff]
      %v363 = vld [vmem:[%s1 + $0x28] sm:$0xff]
      %v364 = vld [vmem:[%s1 + $0x30] sm:$0xff]
      %v365 = vld [vmem:[%s1 + $0x38] sm:$0xff]
      %v366 = vld [vmem:[%s1 + $0x40] sm:$0xff]
      %v367 = vld [vmem:[%s1 + $0x48] sm:$0xff]
      %v368 = vld [vmem:[%s1 + $0x50] sm:$0xff]
      %v369 = vld [vmem:[%s1 + $0x58] sm:$0xff]
      %v370 = vld [vmem:[%s1 + $0x60] sm:$0xff]
      %v371 = vld [vmem:[%s1 + $0x68] sm:$0xff]
      %v372 = vld [vmem:[%s1 + $0x70] sm:$0xff]
      %v373 = vld [vmem:[%s1 + $0x78] sm:$0xff]
      %v374 = vld [vmem:[%s2] sm:$0x1]
      %v376 = vperm.slane %v374, 0
      %378 = vmatpush.msra.mxu0 %v373
      %379 = vmatpush.msra.mxu0 %v372
      %380 = vmatpush.msra.mxu0 %v371
      %381 = vmatpush.msra.mxu0 %v370
      %382 = vmatpush.msra.mxu0 %v369
      %383 = vmatpush.msra.mxu0 %v368
      %384 = vmatpush.msra.mxu0 %v367
      %385 = vmatpush.msra.mxu0 %v366
      %386 = vmatpush.msra.mxu0 %v365
      %387 = vmatpush.msra.mxu0 %v364
      %388 = vmatpush.msra.mxu0 %v363
      %389 = vmatpush.msra.mxu0 %v362
      %390 = vmatpush.msra.mxu0 %v361
      %391 = vmatpush.msra.mxu0 %v360
      %392 = vmatpush.msra.mxu0 %v359
      %393 = vmatpush.msra.mxu0 %v358
      %394 = vmatmul.f32.gmra.mxu0 %v318
      %v395 = vpop.f32.mrf.mxu0
      %v396 = vadd.f32 %v376, %v395
      %397 = vmatmul.f32.gmra.mxu0 %v319
      %v398 = vpop.f32.mrf.mxu0
      %v399 = vadd.f32 %v376, %v398
      %400 = vmatmul.f32.gmra.mxu0 %v320
      %v401 = vpop.f32.mrf.mxu0
      %v402 = vadd.f32 %v376, %v401
      %403 = vmatmul.f32.gmra.mxu0 %v321
      %v404 = vpop.f32.mrf.mxu0
      %v405 = vadd.f32 %v376, %v404
      %406 = vmatmul.f32.gmra.mxu0 %v322
      %v407 = vpop.f32.mrf.mxu0
      %v408 = vadd.f32 %v376, %v407
      %409 = vmatmul.f32.gmra.mxu0 %v323
      %v410 = vpop.f32.mrf.mxu0
      %v411 = vadd.f32 %v376, %v410
      %412 = vmatmul.f32.gmra.mxu0 %v324
      %v413 = vpop.f32.mrf.mxu0
      %v414 = vadd.f32 %v376, %v413
      %415 = vmatmul.f32.gmra.mxu0 %v325
      %v416 = vpop.f32.mrf.mxu0
      %v417 = vadd.f32 %v376, %v416
      %418 = vmatmul.f32.gmra.mxu0 %v326
      %v419 = vpop.f32.mrf.mxu0
      %v420 = vadd.f32 %v376, %v419
      %421 = vmatmul.f32.gmra.mxu0 %v327
      %v422 = vpop.f32.mrf.mxu0
      %v423 = vadd.f32 %v376, %v422
      %424 = vmatmul.f32.gmra.mxu0 %v328
      %v425 = vpop.f32.mrf.mxu0
      %v426 = vadd.f32 %v376, %v425
      %427 = vmatmul.f32.gmra.mxu0 %v329
      %v428 = vpop.f32.mrf.mxu0
      %v429 = vadd.f32 %v376, %v428
      %430 = vmatmul.f32.gmra.mxu0 %v330
      %v431 = vpop.f32.mrf.mxu0
      %v432 = vadd.f32 %v376, %v431
      %433 = vmatmul.f32.gmra.mxu0 %v331
      %v434 = vpop.f32.mrf.mxu0
      %v435 = vadd.f32 %v376, %v434
      %436 = vmatmul.f32.gmra.mxu0 %v332
      %v437 = vpop.f32.mrf.mxu0
      %v438 = vadd.f32 %v376, %v437
      %439 = vmatmul.f32.gmra.mxu0 %v333
      %v440 = vpop.f32.mrf.mxu0
      %v441 = vadd.f32 %v376, %v440
      %442 = vmatmul.f32.gmra.mxu0 %v334
      %v443 = vpop.f32.mrf.mxu0
      %v444 = vadd.f32 %v376, %v443
      %445 = vmatmul.f32.gmra.mxu0 %v335
      %v446 = vpop.f32.mrf.mxu0
      %v447 = vadd.f32 %v376, %v446
      %448 = vmatmul.f32.gmra.mxu0 %v336
      %v449 = vpop.f32.mrf.mxu0
      %v450 = vadd.f32 %v376, %v449
      %451 = vmatmul.f32.gmra.mxu0 %v337
      %v452 = vpop.f32.mrf.mxu0
      %v453 = vadd.f32 %v376, %v452
      %454 = vmatmul.f32.gmra.mxu0 %v338
      %v455 = vpop.f32.mrf.mxu0
      %v456 = vadd.f32 %v376, %v455
      %457 = vmatmul.f32.gmra.mxu0 %v339
      %v458 = vpop.f32.mrf.mxu0
      %v459 = vadd.f32 %v376, %v458
      %460 = vmatmul.f32.gmra.mxu0 %v340
      %v461 = vpop.f32.mrf.mxu0
      %v462 = vadd.f32 %v376, %v461
      %463 = vmatmul.f32.gmra.mxu0 %v341
      %v464 = vpop.f32.mrf.mxu0
      %v465 = vadd.f32 %v376, %v464
      %466 = vmatmul.f32.gmra.mxu0 %v342
      %v467 = vpop.f32.mrf.mxu0
      %v468 = vadd.f32 %v376, %v467
      %469 = vmatmul.f32.gmra.mxu0 %v343
      %v470 = vpop.f32.mrf.mxu0
      %v471 = vadd.f32 %v376, %v470
      %472 = vmatmul.f32.gmra.mxu0 %v344
      %v473 = vpop.f32.mrf.mxu0
      %v474 = vadd.f32 %v376, %v473
      %475 = vmatmul.f32.gmra.mxu0 %v345
      %v476 = vpop.f32.mrf.mxu0
      %v477 = vadd.f32 %v376, %v476
      %478 = vmatmul.f32.gmra.mxu0 %v346
      %v479 = vpop.f32.mrf.mxu0
      %v480 = vadd.f32 %v376, %v479
      %481 = vmatmul.f32.gmra.mxu0 %v347
      %v482 = vpop.f32.mrf.mxu0
      %v483 = vadd.f32 %v376, %v482
      %484 = vmatmul.f32.gmra.mxu0 %v348
      %v485 = vpop.f32.mrf.mxu0
      %v486 = vadd.f32 %v376, %v485
      %487 = vmatmul.f32.gmra.mxu0 %v349
      %v488 = vpop.f32.mrf.mxu0
      %v489 = vadd.f32 %v376, %v488
      %490 = vmatmul.f32.gmra.mxu0 %v350
      %v491 = vpop.f32.mrf.mxu0
      %v492 = vadd.f32 %v376, %v491
      %493 = vmatmul.f32.gmra.mxu0 %v351
      %v494 = vpop.f32.mrf.mxu0
      %v495 = vadd.f32 %v376, %v494
      %496 = vmatmul.f32.gmra.mxu0 %v352
      %v497 = vpop.f32.mrf.mxu0
      %v498 = vadd.f32 %v376, %v497
      %499 = vmatmul.f32.gmra.mxu0 %v353
      %v500 = vpop.f32.mrf.mxu0
      %v501 = vadd.f32 %v376, %v500
      %502 = vmatmul.f32.gmra.mxu0 %v354
      %v503 = vpop.f32.mrf.mxu0
      %v504 = vadd.f32 %v376, %v503
      %505 = vmatmul.f32.gmra.mxu0 %v355
      %v506 = vpop.f32.mrf.mxu0
      %v507 = vadd.f32 %v376, %v506
      %508 = vmatmul.f32.gmra.mxu0 %v356
      %v509 = vpop.f32.mrf.mxu0
      %v510 = vadd.f32 %v376, %v509
      %511 = vmatmul.f32.gmra.mxu0 %v357
      %v512 = vpop.f32.mrf.mxu0
      %v513 = vadd.f32 %v376, %v512
      %514 = vdwg.mxu0
      %v515 = vmax.f32 %v396, 0.0
      %v516 = vmax.f32 %v399, 0.0
      %v517 = vmax.f32 %v402, 0.0
      %v518 = vmax.f32 %v405, 0.0
      %v519 = vmax.f32 %v408, 0.0
      %v520 = vmax.f32 %v411, 0.0
      %v521 = vmax.f32 %v414, 0.0
      %v522 = vmax.f32 %v417, 0.0
      %v523 = vmax.f32 %v420, 0.0
      %v524 = vmax.f32 %v423, 0.0
      %v525 = vmax.f32 %v426, 0.0
      %v526 = vmax.f32 %v429, 0.0
      %v527 = vmax.f32 %v432, 0.0
      %v528 = vmax.f32 %v435, 0.0
      %v529 = vmax.f32 %v438, 0.0
      %v530 = vmax.f32 %v441, 0.0
      %v531 = vmax.f32 %v444, 0.0
      %v532 = vmax.f32 %v447, 0.0
      %v533 = vmax.f32 %v450, 0.0
      %v534 = vmax.f32 %v453, 0.0
      %v535 = vmax.f32 %v456, 0.0
      %v536 = vmax.f32 %v459, 0.0
      %v537 = vmax.f32 %v462, 0.0
      %v538 = vmax.f32 %v465, 0.0
      %v539 = vmax.f32 %v468, 0.0
      %v540 = vmax.f32 %v471, 0.0
      %v541 = vmax.f32 %v474, 0.0
      %v542 = vmax.f32 %v477, 0.0
      %v543 = vmax.f32 %v480, 0.0
      %v544 = vmax.f32 %v483, 0.0
      %v545 = vmax.f32 %v486, 0.0
      %v546 = vmax.f32 %v489, 0.0
      %v547 = vmax.f32 %v492, 0.0
      %v548 = vmax.f32 %v495, 0.0
      %v549 = vmax.f32 %v498, 0.0
      %v550 = vmax.f32 %v501, 0.0
      %v551 = vmax.f32 %v504, 0.0
      %v552 = vmax.f32 %v507, 0.0
      %v553 = vmax.f32 %v510, 0.0
      %v554 = vmax.f32 %v513, 0.0
      %v555 = vlaneseq
      %v556 = vshrl.u32 %v555, 7
      %v557 = vadd.s32 %v556, 8
      %v558 = vadd.s32 %v556, 16
      %v559 = vadd.s32 %v556, 24
      %s560 = smul.u32 %s23, 8
      %v561 = vstv %s560
      %v562 = vadd.s32 %v561, 1
      %v563 = vadd.s32 %v561, 2
      %v564 = vadd.s32 %v561, 3
      %v565 = vadd.s32 %v561, 4
      %v566 = vadd.s32 %v561, 5
      %v567 = vadd.s32 %v561, 6
      %v568 = vadd.s32 %v561, 7
      %v569 = vadd.s32 %v561, 8
      %v570 = vadd.s32 %v561, 9
      %vm571 = vcmp.ge.s32.totalorder %v561, 1
      %vm572 = vcmp.ge.s32.totalorder %v562, 1
      %vm573 = vcmp.ge.s32.totalorder %v563, 1
      %vm574 = vcmp.ge.s32.totalorder %v564, 1
      %vm575 = vcmp.ge.s32.totalorder %v565, 1
      %vm576 = vcmp.ge.s32.totalorder %v566, 1
      %vm577 = vcmp.ge.s32.totalorder %v567, 1
      %vm578 = vcmp.ge.s32.totalorder %v568, 1
      %vm579 = vcmp.ge.s32.totalorder %v569, 1
      %vm580 = vcmp.ge.s32.totalorder %v570, 1
      %vm581 = vcmp.le.s32.totalorder %v561, 16
      %vm582 = vcmp.le.s32.totalorder %v562, 16
      %vm583 = vcmp.le.s32.totalorder %v563, 16
      %vm584 = vcmp.le.s32.totalorder %v564, 16
      %vm585 = vcmp.le.s32.totalorder %v565, 16
      %vm586 = vcmp.le.s32.totalorder %v566, 16
      %vm587 = vcmp.le.s32.totalorder %v567, 16
      %vm588 = vcmp.le.s32.totalorder %v568, 16
      %vm589 = vcmp.le.s32.totalorder %v569, 16
      %vm590 = vcmp.le.s32.totalorder %v570, 16
      %vm591 = vmand %vm571, %vm581
      %vm592 = vmand %vm572, %vm582
      %vm593 = vmand %vm573, %vm583
      %vm594 = vmand %vm574, %vm584
      %vm595 = vmand %vm575, %vm585
      %vm596 = vmand %vm576, %vm586
      %vm597 = vmand %vm577, %vm587
      %vm598 = vmand %vm578, %vm588
      %vm599 = vmand %vm579, %vm589
      %vm600 = vmand %vm580, %vm590
      %vm601 = vcmp.ge.s32.totalorder %v556, 1
      %vm602 = vcmp.ge.s32.totalorder %v557, 1
      %vm603 = vcmp.ge.s32.totalorder %v558, 1
      %vm604 = vcmp.ge.s32.totalorder %v559, 1
      %vm605 = vmand %vm591, %vm601
      %vm606 = vmand %vm591, %vm602
      %vm607 = vmand %vm591, %vm603
      %vm608 = vmand %vm591, %vm604
      %vm609 = vmand %vm592, %vm601
      %vm610 = vmand %vm592, %vm602
      %vm611 = vmand %vm592, %vm603
      %vm612 = vmand %vm592, %vm604
      %vm613 = vmand %vm593, %vm601
      %vm614 = vmand %vm593, %vm602
      %vm615 = vmand %vm593, %vm603
      %vm616 = vmand %vm593, %vm604
      %vm617 = vmand %vm594, %vm601
      %vm618 = vmand %vm594, %vm602
      %vm619 = vmand %vm594, %vm603
      %vm620 = vmand %vm594, %vm604
      %vm621 = vmand %vm595, %vm601
      %vm622 = vmand %vm595, %vm602
      %vm623 = vmand %vm595, %vm603
      %vm624 = vmand %vm595, %vm604
      %vm625 = vmand %vm596, %vm601
      %vm626 = vmand %vm596, %vm602
      %vm627 = vmand %vm596, %vm603
      %vm628 = vmand %vm596, %vm604
      %vm629 = vmand %vm597, %vm601
      %vm630 = vmand %vm597, %vm602
      %vm631 = vmand %vm597, %vm603
      %vm632 = vmand %vm597, %vm604
      %vm633 = vmand %vm598, %vm601
      %vm634 = vmand %vm598, %vm602
      %vm635 = vmand %vm598, %vm603
      %vm636 = vmand %vm598, %vm604
      %vm637 = vmand %vm599, %vm601
      %vm638 = vmand %vm599, %vm602
      %vm639 = vmand %vm599, %vm603
      %vm640 = vmand %vm599, %vm604
      %vm641 = vmand %vm600, %vm601
      %vm642 = vmand %vm600, %vm602
      %vm643 = vmand %vm600, %vm603
      %vm644 = vmand %vm600, %vm604
      %vm645 = vcmp.le.s32.totalorder %v556, 16
      %vm646 = vcmp.le.s32.totalorder %v557, 16
      %vm647 = vcmp.le.s32.totalorder %v558, 16
      %vm648 = vcmp.le.s32.totalorder %v559, 16
      %vm649 = vmand %vm605, %vm645
      %vm650 = vmand %vm606, %vm646
      %vm651 = vmand %vm607, %vm647
      %vm652 = vmand %vm608, %vm648
      %vm653 = vmand %vm609, %vm645
      %vm654 = vmand %vm610, %vm646
      %vm655 = vmand %vm611, %vm647
      %vm656 = vmand %vm612, %vm648
      %vm657 = vmand %vm613, %vm645
      %vm658 = vmand %vm614, %vm646
      %vm659 = vmand %vm615, %vm647
      %vm660 = vmand %vm616, %vm648
      %vm661 = vmand %vm617, %vm645
      %vm662 = vmand %vm618, %vm646
      %vm663 = vmand %vm619, %vm647
      %vm664 = vmand %vm620, %vm648
      %vm665 = vmand %vm621, %vm645
      %vm666 = vmand %vm622, %vm646
      %vm667 = vmand %vm623, %vm647
      %vm668 = vmand %vm624, %vm648
      %vm669 = vmand %vm625, %vm645
      %vm670 = vmand %vm626, %vm646
      %vm671 = vmand %vm627, %vm647
      %vm672 = vmand %vm628, %vm648
      %vm673 = vmand %vm629, %vm645
      %vm674 = vmand %vm630, %vm646
      %vm675 = vmand %vm631, %vm647
      %vm676 = vmand %vm632, %vm648
      %vm677 = vmand %vm633, %vm645
      %vm678 = vmand %vm634, %vm646
      %vm679 = vmand %vm635, %vm647
      %vm680 = vmand %vm636, %vm648
      %vm681 = vmand %vm637, %vm645
      %vm682 = vmand %vm638, %vm646
      %vm683 = vmand %vm639, %vm647
      %vm684 = vmand %vm640, %vm648
      %vm685 = vmand %vm641, %vm645
      %vm686 = vmand %vm642, %vm646
      %vm687 = vmand %vm643, %vm647
      %vm688 = vmand %vm644, %vm648
      %v689 = vsel %vm649, 1, 0
      %v690 = vsel %vm650, 1, 0
      %v691 = vsel %vm651, 1, 0
      %v692 = vsel %vm652, 1, 0
      %v693 = vsel %vm653, 1, 0
      %v694 = vsel %vm654, 1, 0
      %v695 = vsel %vm655, 1, 0
      %v696 = vsel %vm656, 1, 0
      %v697 = vsel %vm657, 1, 0
      %v698 = vsel %vm658, 1, 0
      %v699 = vsel %vm659, 1, 0
      %v700 = vsel %vm660, 1, 0
      %v701 = vsel %vm661, 1, 0
      %v702 = vsel %vm662, 1, 0
      %v703 = vsel %vm663, 1, 0
      %v704 = vsel %vm664, 1, 0
      %v705 = vsel %vm665, 1, 0
      %v706 = vsel %vm666, 1, 0
      %v707 = vsel %vm667, 1, 0
      %v708 = vsel %vm668, 1, 0
      %v709 = vsel %vm669, 1, 0
      %v710 = vsel %vm670, 1, 0
      %v711 = vsel %vm671, 1, 0
      %v712 = vsel %vm672, 1, 0
      %v713 = vsel %vm673, 1, 0
      %v714 = vsel %vm674, 1, 0
      %v715 = vsel %vm675, 1, 0
      %v716 = vsel %vm676, 1, 0
      %v717 = vsel %vm677, 1, 0
      %v718 = vsel %vm678, 1, 0
      %v719 = vsel %vm679, 1, 0
      %v720 = vsel %vm680, 1, 0
      %v721 = vsel %vm681, 1, 0
      %v722 = vsel %vm682, 1, 0
      %v723 = vsel %vm683, 1, 0
      %v724 = vsel %vm684, 1, 0
      %v725 = vsel %vm685, 1, 0
      %v726 = vsel %vm686, 1, 0
      %v727 = vsel %vm687, 1, 0
      %v728 = vsel %vm688, 1, 0
      %vm729 = vcmp.eq.s32.totalorder %v689, 1
      %vm730 = vcmp.eq.s32.totalorder %v690, 1
      %vm731 = vcmp.eq.s32.totalorder %v691, 1
      %vm732 = vcmp.eq.s32.totalorder %v692, 1
      %vm733 = vcmp.eq.s32.totalorder %v693, 1
      %vm734 = vcmp.eq.s32.totalorder %v694, 1
      %vm735 = vcmp.eq.s32.totalorder %v695, 1
      %vm736 = vcmp.eq.s32.totalorder %v696, 1
      %vm737 = vcmp.eq.s32.totalorder %v697, 1
      %vm738 = vcmp.eq.s32.totalorder %v698, 1
      %vm739 = vcmp.eq.s32.totalorder %v699, 1
      %vm740 = vcmp.eq.s32.totalorder %v700, 1
      %vm741 = vcmp.eq.s32.totalorder %v701, 1
      %vm742 = vcmp.eq.s32.totalorder %v702, 1
      %vm743 = vcmp.eq.s32.totalorder %v703, 1
      %vm744 = vcmp.eq.s32.totalorder %v704, 1
      %vm745 = vcmp.eq.s32.totalorder %v705, 1
      %vm746 = vcmp.eq.s32.totalorder %v706, 1
      %vm747 = vcmp.eq.s32.totalorder %v707, 1
      %vm748 = vcmp.eq.s32.totalorder %v708, 1
      %vm749 = vcmp.eq.s32.totalorder %v709, 1
      %vm750 = vcmp.eq.s32.totalorder %v710, 1
      %vm751 = vcmp.eq.s32.totalorder %v711, 1
      %vm752 = vcmp.eq.s32.totalorder %v712, 1
      %vm753 = vcmp.eq.s32.totalorder %v713, 1
      %vm754 = vcmp.eq.s32.totalorder %v714, 1
      %vm755 = vcmp.eq.s32.totalorder %v715, 1
      %vm756 = vcmp.eq.s32.totalorder %v716, 1
      %vm757 = vcmp.eq.s32.totalorder %v717, 1
      %vm758 = vcmp.eq.s32.totalorder %v718, 1
      %vm759 = vcmp.eq.s32.totalorder %v719, 1
      %vm760 = vcmp.eq.s32.totalorder %v720, 1
      %vm761 = vcmp.eq.s32.totalorder %v721, 1
      %vm762 = vcmp.eq.s32.totalorder %v722, 1
      %vm763 = vcmp.eq.s32.totalorder %v723, 1
      %vm764 = vcmp.eq.s32.totalorder %v724, 1
      %vm765 = vcmp.eq.s32.totalorder %v725, 1
      %vm766 = vcmp.eq.s32.totalorder %v726, 1
      %vm767 = vcmp.eq.s32.totalorder %v727, 1
      %vm768 = vcmp.eq.s32.totalorder %v728, 1
      %v769 = vsel %vm729, %v515, 0.0
      %v770 = vsel %vm730, %v516, 0.0
      %v771 = vsel %vm731, %v517, 0.0
      %v772 = vsel %vm732, %v518, 0.0
      %v773 = vsel %vm733, %v519, 0.0
      %v774 = vsel %vm734, %v520, 0.0
      %v775 = vsel %vm735, %v521, 0.0
      %v776 = vsel %vm736, %v522, 0.0
      %v777 = vsel %vm737, %v523, 0.0
      %v778 = vsel %vm738, %v524, 0.0
      %v779 = vsel %vm739, %v525, 0.0
      %v780 = vsel %vm740, %v526, 0.0
      %v781 = vsel %vm741, %v527, 0.0
      %v782 = vsel %vm742, %v528, 0.0
      %v783 = vsel %vm743, %v529, 0.0
      %v784 = vsel %vm744, %v530, 0.0
      %v785 = vsel %vm745, %v531, 0.0
      %v786 = vsel %vm746, %v532, 0.0
      %v787 = vsel %vm747, %v533, 0.0
      %v788 = vsel %vm748, %v534, 0.0
      %v789 = vsel %vm749, %v535, 0.0
      %v790 = vsel %vm750, %v536, 0.0
      %v791 = vsel %vm751, %v537, 0.0
      %v792 = vsel %vm752, %v538, 0.0
      %v793 = vsel %vm753, %v539, 0.0
      %v794 = vsel %vm754, %v540, 0.0
      %v795 = vsel %vm755, %v541, 0.0
      %v796 = vsel %vm756, %v542, 0.0
      %v797 = vsel %vm757, %v543, 0.0
      %v798 = vsel %vm758, %v544, 0.0
      %v799 = vsel %vm759, %v545, 0.0
      %v800 = vsel %vm760, %v546, 0.0
      %v801 = vsel %vm761, %v547, 0.0
      %v802 = vsel %vm762, %v548, 0.0
      %v803 = vsel %vm763, %v549, 0.0
      %v804 = vsel %vm764, %v550, 0.0
      %v805 = vsel %vm765, %v551, 0.0
      %v806 = vsel %vm766, %v552, 0.0
      %v807 = vsel %vm767, %v553, 0.0
      %v808 = vsel %vm768, %v554, 0.0
      %v809 = vrot.slane %v769, 1
      %v810 = vrot.slane %v770, 1
      %v811 = vrot.slane %v771, 1
      %v812 = vrot.slane %v772, 1
      %v813 = vrot.slane %v773, 1
      %v814 = vrot.slane %v774, 1
      %v815 = vrot.slane %v775, 1
      %v816 = vrot.slane %v776, 1
      %v817 = vrot.slane %v777, 1
      %v818 = vrot.slane %v778, 1
      %v819 = vrot.slane %v779, 1
      %v820 = vrot.slane %v780, 1
      %v821 = vrot.slane %v781, 1
      %v822 = vrot.slane %v782, 1
      %v823 = vrot.slane %v783, 1
      %v824 = vrot.slane %v784, 1
      %v825 = vrot.slane %v785, 1
      %v826 = vrot.slane %v786, 1
      %v827 = vrot.slane %v787, 1
      %v828 = vrot.slane %v788, 1
      %v829 = vrot.slane %v789, 1
      %v830 = vrot.slane %v790, 1
      %v831 = vrot.slane %v791, 1
      %v832 = vrot.slane %v792, 1
      %v833 = vrot.slane %v793, 1
      %v834 = vrot.slane %v794, 1
      %v835 = vrot.slane %v795, 1
      %v836 = vrot.slane %v796, 1
      %v837 = vrot.slane %v797, 1
      %v838 = vrot.slane %v798, 1
      %v839 = vrot.slane %v799, 1
      %v840 = vrot.slane %v800, 1
      %v841 = vrot.slane %v801, 1
      %v842 = vrot.slane %v802, 1
      %v843 = vrot.slane %v803, 1
      %v844 = vrot.slane %v804, 1
      %v845 = vrot.slane %v805, 1
      %v846 = vrot.slane %v806, 1
      %v847 = vrot.slane %v807, 1
      %v848 = vrot.slane %v808, 1
      %vm849 = vcmp.lt.s32.totalorder %v556, 7
      %v850 = vsel %vm849, %v847, %v848
      %v851 = vsel %vm849, %v846, %v847
      %v852 = vsel %vm849, %v845, %v846
      %v853 = vsel %vm849, %v844, %v845
      %v854 = vsel %vm849, %v843, %v844
      %v855 = vsel %vm849, %v842, %v843
      %v856 = vsel %vm849, %v841, %v842
      %v857 = vsel %vm849, %v840, %v841
      %v858 = vsel %vm849, %v839, %v840
      %v859 = vsel %vm849, %v838, %v839
      %v860 = vsel %vm849, %v837, %v838
      %v861 = vsel %vm849, %v836, %v837
      %v862 = vsel %vm849, %v835, %v836
      %v863 = vsel %vm849, %v834, %v835
      %v864 = vsel %vm849, %v833, %v834
      %v865 = vsel %vm849, %v832, %v833
      %v866 = vsel %vm849, %v831, %v832
      %v867 = vsel %vm849, %v830, %v831
      %v868 = vsel %vm849, %v829, %v830
      %v869 = vsel %vm849, %v828, %v829
      %v870 = vsel %vm849, %v827, %v828
      %v871 = vsel %vm849, %v826, %v827
      %v872 = vsel %vm849, %v825, %v826
      %v873 = vsel %vm849, %v824, %v825
      %v874 = vsel %vm849, %v823, %v824
      %v875 = vsel %vm849, %v822, %v823
      %v876 = vsel %vm849, %v821, %v822
      %v877 = vsel %vm849, %v820, %v821
      %v878 = vsel %vm849, %v819, %v820
      %v879 = vsel %vm849, %v818, %v819
      %v880 = vsel %vm849, %v817, %v818
      %v881 = vsel %vm849, %v816, %v817
      %v882 = vsel %vm849, %v815, %v816
      %v883 = vsel %vm849, %v814, %v815
      %v884 = vsel %vm849, %v813, %v814
      %v885 = vsel %vm849, %v812, %v813
      %v886 = vsel %vm849, %v811, %v812
      %v887 = vsel %vm849, %v810, %v811
      %v888 = vsel %vm849, %v809, %v810
      %v889 = vsel %vm849, %v848, %v809
      %v890 = vrot.slane %v769, 2
      %v891 = vrot.slane %v770, 2
      %v892 = vrot.slane %v771, 2
      %v893 = vrot.slane %v772, 2
      %v894 = vrot.slane %v773, 2
      %v895 = vrot.slane %v774, 2
      %v896 = vrot.slane %v775, 2
      %v897 = vrot.slane %v776, 2
      %v898 = vrot.slane %v777, 2
      %v899 = vrot.slane %v778, 2
      %v900 = vrot.slane %v779, 2
      %v901 = vrot.slane %v780, 2
      %v902 = vrot.slane %v781, 2
      %v903 = vrot.slane %v782, 2
      %v904 = vrot.slane %v783, 2
      %v905 = vrot.slane %v784, 2
      %v906 = vrot.slane %v785, 2
      %v907 = vrot.slane %v786, 2
      %v908 = vrot.slane %v787, 2
      %v909 = vrot.slane %v788, 2
      %v910 = vrot.slane %v789, 2
      %v911 = vrot.slane %v790, 2
      %v912 = vrot.slane %v791, 2
      %v913 = vrot.slane %v792, 2
      %v914 = vrot.slane %v793, 2
      %v915 = vrot.slane %v794, 2
      %v916 = vrot.slane %v795, 2
      %v917 = vrot.slane %v796, 2
      %v918 = vrot.slane %v797, 2
      %v919 = vrot.slane %v798, 2
      %v920 = vrot.slane %v799, 2
      %v921 = vrot.slane %v800, 2
      %v922 = vrot.slane %v801, 2
      %v923 = vrot.slane %v802, 2
      %v924 = vrot.slane %v803, 2
      %v925 = vrot.slane %v804, 2
      %v926 = vrot.slane %v805, 2
      %v927 = vrot.slane %v806, 2
      %v928 = vrot.slane %v807, 2
      %v929 = vrot.slane %v808, 2
      %vm930 = vcmp.lt.s32.totalorder %v556, 6
      %v931 = vsel %vm930, %v928, %v929
      %v932 = vsel %vm930, %v927, %v928
      %v933 = vsel %vm930, %v926, %v927
      %v934 = vsel %vm930, %v925, %v926
      %v935 = vsel %vm930, %v924, %v925
      %v936 = vsel %vm930, %v923, %v924
      %v937 = vsel %vm930, %v922, %v923
      %v938 = vsel %vm930, %v921, %v922
      %v939 = vsel %vm930, %v920, %v921
      %v940 = vsel %vm930, %v919, %v920
      %v941 = vsel %vm930, %v918, %v919
      %v942 = vsel %vm930, %v917, %v918
      %v943 = vsel %vm930, %v916, %v917
      %v944 = vsel %vm930, %v915, %v916
      %v945 = vsel %vm930, %v914, %v915
      %v946 = vsel %vm930, %v913, %v914
      %v947 = vsel %vm930, %v912, %v913
      %v948 = vsel %vm930, %v911, %v912
      %v949 = vsel %vm930, %v910, %v911
      %v950 = vsel %vm930, %v909, %v910
      %v951 = vsel %vm930, %v908, %v909
      %v952 = vsel %vm930, %v907, %v908
      %v953 = vsel %vm930, %v906, %v907
      %v954 = vsel %vm930, %v905, %v906
      %v955 = vsel %vm930, %v904, %v905
      %v956 = vsel %vm930, %v903, %v904
      %v957 = vsel %vm930, %v902, %v903
      %v958 = vsel %vm930, %v901, %v902
      %v959 = vsel %vm930, %v900, %v901
      %v960 = vsel %vm930, %v899, %v900
      %v961 = vsel %vm930, %v898, %v899
      %v962 = vsel %vm930, %v897, %v898
      %v963 = vsel %vm930, %v896, %v897
      %v964 = vsel %vm930, %v895, %v896
      %v965 = vsel %vm930, %v894, %v895
      %v966 = vsel %vm930, %v893, %v894
      %v967 = vsel %vm930, %v892, %v893
      %v968 = vsel %vm930, %v891, %v892
      %v969 = vsel %vm930, %v890, %v891
      %v970 = vsel %vm930, %v929, %v890
      %v971 = vld [vmem:[%s3] sm:$0xff]
      %v972 = vld [vmem:[%s3 + $0x8] sm:$0xff]
      %v973 = vld [vmem:[%s3 + $0x10] sm:$0xff]
      %v974 = vld [vmem:[%s3 + $0x18] sm:$0xff]
      %v975 = vld [vmem:[%s3 + $0x20] sm:$0xff]
      %v976 = vld [vmem:[%s3 + $0x28] sm:$0xff]
      %v977 = vld [vmem:[%s3 + $0x30] sm:$0xff]
      %v978 = vld [vmem:[%s3 + $0x38] sm:$0xff]
      %v979 = vld [vmem:[%s3 + $0x40] sm:$0xff]
      %v980 = vld [vmem:[%s3 + $0x48] sm:$0xff]
      %v981 = vld [vmem:[%s3 + $0x50] sm:$0xff]
      %v982 = vld [vmem:[%s3 + $0x58] sm:$0xff]
      %v983 = vld [vmem:[%s3 + $0x60] sm:$0xff]
      %v984 = vld [vmem:[%s3 + $0x68] sm:$0xff]
      %v985 = vld [vmem:[%s3 + $0x70] sm:$0xff]
      %v986 = vld [vmem:[%s3 + $0x78] sm:$0xff]
      %v987 = vld [vmem:[%s3 + $0x80] sm:$0xff]
      %v988 = vld [vmem:[%s3 + $0x88] sm:$0xff]
      %v989 = vld [vmem:[%s3 + $0x90] sm:$0xff]
      %v990 = vld [vmem:[%s3 + $0x98] sm:$0xff]
      %v991 = vld [vmem:[%s3 + $0xa0] sm:$0xff]
      %v992 = vld [vmem:[%s3 + $0xa8] sm:$0xff]
      %v993 = vld [vmem:[%s3 + $0xb0] sm:$0xff]
      %v994 = vld [vmem:[%s3 + $0xb8] sm:$0xff]
      %v995 = vld [vmem:[%s3 + $0xc0] sm:$0xff]
      %v996 = vld [vmem:[%s3 + $0xc8] sm:$0xff]
      %v997 = vld [vmem:[%s3 + $0xd0] sm:$0xff]
      %v998 = vld [vmem:[%s3 + $0xd8] sm:$0xff]
      %v999 = vld [vmem:[%s3 + $0xe0] sm:$0xff]
      %v1000 = vld [vmem:[%s3 + $0xe8] sm:$0xff]
      %v1001 = vld [vmem:[%s3 + $0xf0] sm:$0xff]
      %v1002 = vld [vmem:[%s3 + $0xf8] sm:$0xff]
      %v1003 = vld [vmem:[%s3 + $0x100] sm:$0xff]
      %v1004 = vld [vmem:[%s3 + $0x108] sm:$0xff]
      %v1005 = vld [vmem:[%s3 + $0x110] sm:$0xff]
      %v1006 = vld [vmem:[%s3 + $0x118] sm:$0xff]
      %v1007 = vld [vmem:[%s3 + $0x120] sm:$0xff]
      %v1008 = vld [vmem:[%s3 + $0x128] sm:$0xff]
      %v1009 = vld [vmem:[%s3 + $0x130] sm:$0xff]
      %v1010 = vld [vmem:[%s3 + $0x138] sm:$0xff]
      %v1011 = vld [vmem:[%s3 + $0x140] sm:$0xff]
      %v1012 = vld [vmem:[%s3 + $0x148] sm:$0xff]
      %v1013 = vld [vmem:[%s3 + $0x150] sm:$0xff]
      %v1014 = vld [vmem:[%s3 + $0x158] sm:$0xff]
      %v1015 = vld [vmem:[%s3 + $0x160] sm:$0xff]
      %v1016 = vld [vmem:[%s3 + $0x168] sm:$0xff]
      %v1017 = vld [vmem:[%s3 + $0x170] sm:$0xff]
      %v1018 = vld [vmem:[%s3 + $0x178] sm:$0xff]
      %s1019 = scalar_lea.vmem %s3, 384
      %v1020 = vld [vmem:[%s1019] sm:$0xff]
      %v1021 = vld [vmem:[%s1019 + $0x8] sm:$0xff]
      %v1022 = vld [vmem:[%s1019 + $0x10] sm:$0xff]
      %v1023 = vld [vmem:[%s1019 + $0x18] sm:$0xff]
      %v1024 = vld [vmem:[%s1019 + $0x20] sm:$0xff]
      %v1025 = vld [vmem:[%s1019 + $0x28] sm:$0xff]
      %v1026 = vld [vmem:[%s1019 + $0x30] sm:$0xff]
      %v1027 = vld [vmem:[%s1019 + $0x38] sm:$0xff]
      %v1028 = vld [vmem:[%s1019 + $0x40] sm:$0xff]
      %v1029 = vld [vmem:[%s1019 + $0x48] sm:$0xff]
      %v1030 = vld [vmem:[%s1019 + $0x50] sm:$0xff]
      %v1031 = vld [vmem:[%s1019 + $0x58] sm:$0xff]
      %v1032 = vld [vmem:[%s1019 + $0x60] sm:$0xff]
      %v1033 = vld [vmem:[%s1019 + $0x68] sm:$0xff]
      %v1034 = vld [vmem:[%s1019 + $0x70] sm:$0xff]
      %v1035 = vld [vmem:[%s1019 + $0x78] sm:$0xff]
      %v1036 = vld [vmem:[%s1019 + $0x80] sm:$0xff]
      %v1037 = vld [vmem:[%s1019 + $0x88] sm:$0xff]
      %v1038 = vld [vmem:[%s1019 + $0x90] sm:$0xff]
      %v1039 = vld [vmem:[%s1019 + $0x98] sm:$0xff]
      %v1040 = vld [vmem:[%s1019 + $0xa0] sm:$0xff]
      %v1041 = vld [vmem:[%s1019 + $0xa8] sm:$0xff]
      %v1042 = vld [vmem:[%s1019 + $0xb0] sm:$0xff]
      %v1043 = vld [vmem:[%s1019 + $0xb8] sm:$0xff]
      %v1044 = vld [vmem:[%s1019 + $0xc0] sm:$0xff]
      %v1045 = vld [vmem:[%s1019 + $0xc8] sm:$0xff]
      %v1046 = vld [vmem:[%s1019 + $0xd0] sm:$0xff]
      %v1047 = vld [vmem:[%s1019 + $0xd8] sm:$0xff]
      %v1048 = vld [vmem:[%s1019 + $0xe0] sm:$0xff]
      %v1049 = vld [vmem:[%s1019 + $0xe8] sm:$0xff]
      %v1050 = vld [vmem:[%s1019 + $0xf0] sm:$0xff]
      %v1051 = vld [vmem:[%s1019 + $0xf8] sm:$0xff]
      %v1052 = vld [vmem:[%s1019 + $0x100] sm:$0xff]
      %v1053 = vld [vmem:[%s1019 + $0x108] sm:$0xff]
      %v1054 = vld [vmem:[%s1019 + $0x110] sm:$0xff]
      %v1055 = vld [vmem:[%s1019 + $0x118] sm:$0xff]
      %v1056 = vld [vmem:[%s1019 + $0x120] sm:$0xff]
      %v1057 = vld [vmem:[%s1019 + $0x128] sm:$0xff]
      %v1058 = vld [vmem:[%s1019 + $0x130] sm:$0xff]
      %v1059 = vld [vmem:[%s1019 + $0x138] sm:$0xff]
      %v1060 = vld [vmem:[%s1019 + $0x140] sm:$0xff]
      %v1061 = vld [vmem:[%s1019 + $0x148] sm:$0xff]
      %v1062 = vld [vmem:[%s1019 + $0x150] sm:$0xff]
      %v1063 = vld [vmem:[%s1019 + $0x158] sm:$0xff]
      %v1064 = vld [vmem:[%s1019 + $0x160] sm:$0xff]
      %v1065 = vld [vmem:[%s1019 + $0x168] sm:$0xff]
      %v1066 = vld [vmem:[%s1019 + $0x170] sm:$0xff]
      %v1067 = vld [vmem:[%s1019 + $0x178] sm:$0xff]
      %1068 = vmatpush.msra.mxu0 %v1035
      %1069 = vmatpush.msra.mxu0 %v1034
      %1070 = vmatpush.msra.mxu0 %v1033
      %1071 = vmatpush.msra.mxu0 %v1032
      %1072 = vmatpush.msra.mxu0 %v1031
      %1073 = vmatpush.msra.mxu0 %v1030
      %1074 = vmatpush.msra.mxu0 %v1029
      %1075 = vmatpush.msra.mxu0 %v1028
      %1076 = vmatpush.msra.mxu0 %v1027
      %1077 = vmatpush.msra.mxu0 %v1026
      %1078 = vmatpush.msra.mxu0 %v1025
      %1079 = vmatpush.msra.mxu0 %v1024
      %1080 = vmatpush.msra.mxu0 %v1023
      %1081 = vmatpush.msra.mxu0 %v1022
      %1082 = vmatpush.msra.mxu0 %v1021
      %1083 = vmatpush.msra.mxu0 %v1020
      %1084 = vmatmul.f32.gmra.mxu0 %v773
      %v1085 = vpop.f32.mrf.mxu0
      %v1086 = vadd.f32 0.0, %v1085
      %1087 = vmatmul.f32.gmra.mxu0 %v774
      %v1088 = vpop.f32.mrf.mxu0
      %v1089 = vadd.f32 0.0, %v1088
      %1090 = vmatmul.f32.gmra.mxu0 %v775
      %v1091 = vpop.f32.mrf.mxu0
      %v1092 = vadd.f32 0.0, %v1091
      %1093 = vmatmul.f32.gmra.mxu0 %v776
      %v1094 = vpop.f32.mrf.mxu0
      %v1095 = vadd.f32 0.0, %v1094
      %1096 = vmatmul.f32.gmra.mxu0 %v777
      %v1097 = vpop.f32.mrf.mxu0
      %v1098 = vadd.f32 0.0, %v1097
      %1099 = vmatmul.f32.gmra.mxu0 %v778
      %v1100 = vpop.f32.mrf.mxu0
      %v1101 = vadd.f32 0.0, %v1100
      %1102 = vmatmul.f32.gmra.mxu0 %v779
      %v1103 = vpop.f32.mrf.mxu0
      %v1104 = vadd.f32 0.0, %v1103
      %1105 = vmatmul.f32.gmra.mxu0 %v780
      %v1106 = vpop.f32.mrf.mxu0
      %v1107 = vadd.f32 0.0, %v1106
      %1108 = vmatmul.f32.gmra.mxu0 %v781
      %v1109 = vpop.f32.mrf.mxu0
      %v1110 = vadd.f32 0.0, %v1109
      %1111 = vmatmul.f32.gmra.mxu0 %v782
      %v1112 = vpop.f32.mrf.mxu0
      %v1113 = vadd.f32 0.0, %v1112
      %1114 = vmatmul.f32.gmra.mxu0 %v783
      %v1115 = vpop.f32.mrf.mxu0
      %v1116 = vadd.f32 0.0, %v1115
      %1117 = vmatmul.f32.gmra.mxu0 %v784
      %v1118 = vpop.f32.mrf.mxu0
      %v1119 = vadd.f32 0.0, %v1118
      %1120 = vmatmul.f32.gmra.mxu0 %v785
      %v1121 = vpop.f32.mrf.mxu0
      %v1122 = vadd.f32 0.0, %v1121
      %1123 = vmatmul.f32.gmra.mxu0 %v786
      %v1124 = vpop.f32.mrf.mxu0
      %v1125 = vadd.f32 0.0, %v1124
      %1126 = vmatmul.f32.gmra.mxu0 %v787
      %v1127 = vpop.f32.mrf.mxu0
      %v1128 = vadd.f32 0.0, %v1127
      %1129 = vmatmul.f32.gmra.mxu0 %v788
      %v1130 = vpop.f32.mrf.mxu0
      %v1131 = vadd.f32 0.0, %v1130
      %1132 = vmatmul.f32.gmra.mxu0 %v789
      %v1133 = vpop.f32.mrf.mxu0
      %v1134 = vadd.f32 0.0, %v1133
      %1135 = vmatmul.f32.gmra.mxu0 %v790
      %v1136 = vpop.f32.mrf.mxu0
      %v1137 = vadd.f32 0.0, %v1136
      %1138 = vmatmul.f32.gmra.mxu0 %v791
      %v1139 = vpop.f32.mrf.mxu0
      %v1140 = vadd.f32 0.0, %v1139
      %1141 = vmatmul.f32.gmra.mxu0 %v792
      %v1142 = vpop.f32.mrf.mxu0
      %v1143 = vadd.f32 0.0, %v1142
      %1144 = vmatmul.f32.gmra.mxu0 %v793
      %v1145 = vpop.f32.mrf.mxu0
      %v1146 = vadd.f32 0.0, %v1145
      %1147 = vmatmul.f32.gmra.mxu0 %v794
      %v1148 = vpop.f32.mrf.mxu0
      %v1149 = vadd.f32 0.0, %v1148
      %1150 = vmatmul.f32.gmra.mxu0 %v795
      %v1151 = vpop.f32.mrf.mxu0
      %v1152 = vadd.f32 0.0, %v1151
      %1153 = vmatmul.f32.gmra.mxu0 %v796
      %v1154 = vpop.f32.mrf.mxu0
      %v1155 = vadd.f32 0.0, %v1154
      %1156 = vmatmul.f32.gmra.mxu0 %v797
      %v1157 = vpop.f32.mrf.mxu0
      %v1158 = vadd.f32 0.0, %v1157
      %1159 = vmatmul.f32.gmra.mxu0 %v798
      %v1160 = vpop.f32.mrf.mxu0
      %v1161 = vadd.f32 0.0, %v1160
      %1162 = vmatmul.f32.gmra.mxu0 %v799
      %v1163 = vpop.f32.mrf.mxu0
      %v1164 = vadd.f32 0.0, %v1163
      %1165 = vmatmul.f32.gmra.mxu0 %v800
      %v1166 = vpop.f32.mrf.mxu0
      %v1167 = vadd.f32 0.0, %v1166
      %1168 = vmatmul.f32.gmra.mxu0 %v801
      %v1169 = vpop.f32.mrf.mxu0
      %v1170 = vadd.f32 0.0, %v1169
      %1171 = vmatmul.f32.gmra.mxu0 %v802
      %v1172 = vpop.f32.mrf.mxu0
      %v1173 = vadd.f32 0.0, %v1172
      %1174 = vmatmul.f32.gmra.mxu0 %v803
      %v1175 = vpop.f32.mrf.mxu0
      %v1176 = vadd.f32 0.0, %v1175
      %1177 = vmatmul.f32.gmra.mxu0 %v804
      %v1178 = vpop.f32.mrf.mxu0
      %v1179 = vadd.f32 0.0, %v1178
      %1180 = vdwg.mxu0
      %1181 = vmatpush.msra.mxu0 %v1051
      %1182 = vmatpush.msra.mxu0 %v1050
      %1183 = vmatpush.msra.mxu0 %v1049
      %1184 = vmatpush.msra.mxu0 %v1048
      %1185 = vmatpush.msra.mxu0 %v1047
      %1186 = vmatpush.msra.mxu0 %v1046
      %1187 = vmatpush.msra.mxu0 %v1045
      %1188 = vmatpush.msra.mxu0 %v1044
      %1189 = vmatpush.msra.mxu0 %v1043
      %1190 = vmatpush.msra.mxu0 %v1042
      %1191 = vmatpush.msra.mxu0 %v1041
      %1192 = vmatpush.msra.mxu0 %v1040
      %1193 = vmatpush.msra.mxu0 %v1039
      %1194 = vmatpush.msra.mxu0 %v1038
      %1195 = vmatpush.msra.mxu0 %v1037
      %1196 = vmatpush.msra.mxu0 %v1036
      %1197 = vmatmul.f32.gmra.mxu0 %v884
      %v1198 = vpop.f32.mrf.mxu0
      %v1199 = vadd.f32 %v1086, %v1198
      %1200 = vmatmul.f32.gmra.mxu0 %v883
      %v1201 = vpop.f32.mrf.mxu0
      %v1202 = vadd.f32 %v1089, %v1201
      %1203 = vmatmul.f32.gmra.mxu0 %v882
      %v1204 = vpop.f32.mrf.mxu0
      %v1205 = vadd.f32 %v1092, %v1204
      %1206 = vmatmul.f32.gmra.mxu0 %v881
      %v1207 = vpop.f32.mrf.mxu0
      %v1208 = vadd.f32 %v1095, %v1207
      %1209 = vmatmul.f32.gmra.mxu0 %v880
      %v1210 = vpop.f32.mrf.mxu0
      %v1211 = vadd.f32 %v1098, %v1210
      %1212 = vmatmul.f32.gmra.mxu0 %v879
      %v1213 = vpop.f32.mrf.mxu0
      %v1214 = vadd.f32 %v1101, %v1213
      %1215 = vmatmul.f32.gmra.mxu0 %v878
      %v1216 = vpop.f32.mrf.mxu0
      %v1217 = vadd.f32 %v1104, %v1216
      %1218 = vmatmul.f32.gmra.mxu0 %v877
      %v1219 = vpop.f32.mrf.mxu0
      %v1220 = vadd.f32 %v1107, %v1219
      %1221 = vmatmul.f32.gmra.mxu0 %v876
      %v1222 = vpop.f32.mrf.mxu0
      %v1223 = vadd.f32 %v1110, %v1222
      %1224 = vmatmul.f32.gmra.mxu0 %v875
      %v1225 = vpop.f32.mrf.mxu0
      %v1226 = vadd.f32 %v1113, %v1225
      %1227 = vmatmul.f32.gmra.mxu0 %v874
      %v1228 = vpop.f32.mrf.mxu0
      %v1229 = vadd.f32 %v1116, %v1228
      %1230 = vmatmul.f32.gmra.mxu0 %v873
      %v1231 = vpop.f32.mrf.mxu0
      %v1232 = vadd.f32 %v1119, %v1231
      %1233 = vmatmul.f32.gmra.mxu0 %v872
      %v1234 = vpop.f32.mrf.mxu0
      %v1235 = vadd.f32 %v1122, %v1234
      %1236 = vmatmul.f32.gmra.mxu0 %v871
      %v1237 = vpop.f32.mrf.mxu0
      %v1238 = vadd.f32 %v1125, %v1237
      %1239 = vmatmul.f32.gmra.mxu0 %v870
      %v1240 = vpop.f32.mrf.mxu0
      %v1241 = vadd.f32 %v1128, %v1240
      %1242 = vmatmul.f32.gmra.mxu0 %v869
      %v1243 = vpop.f32.mrf.mxu0
      %v1244 = vadd.f32 %v1131, %v1243
      %1245 = vmatmul.f32.gmra.mxu0 %v868
      %v1246 = vpop.f32.mrf.mxu0
      %v1247 = vadd.f32 %v1134, %v1246
      %1248 = vmatmul.f32.gmra.mxu0 %v867
      %v1249 = vpop.f32.mrf.mxu0
      %v1250 = vadd.f32 %v1137, %v1249
      %1251 = vmatmul.f32.gmra.mxu0 %v866
      %v1252 = vpop.f32.mrf.mxu0
      %v1253 = vadd.f32 %v1140, %v1252
      %1254 = vmatmul.f32.gmra.mxu0 %v865
      %v1255 = vpop.f32.mrf.mxu0
      %v1256 = vadd.f32 %v1143, %v1255
      %1257 = vmatmul.f32.gmra.mxu0 %v864
      %v1258 = vpop.f32.mrf.mxu0
      %v1259 = vadd.f32 %v1146, %v1258
      %1260 = vmatmul.f32.gmra.mxu0 %v863
      %v1261 = vpop.f32.mrf.mxu0
      %v1262 = vadd.f32 %v1149, %v1261
      %1263 = vmatmul.f32.gmra.mxu0 %v862
      %v1264 = vpop.f32.mrf.mxu0
      %v1265 = vadd.f32 %v1152, %v1264
      %1266 = vmatmul.f32.gmra.mxu0 %v861
      %v1267 = vpop.f32.mrf.mxu0
      %v1268 = vadd.f32 %v1155, %v1267
      %1269 = vmatmul.f32.gmra.mxu0 %v860
      %v1270 = vpop.f32.mrf.mxu0
      %v1271 = vadd.f32 %v1158, %v1270
      %1272 = vmatmul.f32.gmra.mxu0 %v859
      %v1273 = vpop.f32.mrf.mxu0
      %v1274 = vadd.f32 %v1161, %v1273
      %1275 = vmatmul.f32.gmra.mxu0 %v858
      %v1276 = vpop.f32.mrf.mxu0
      %v1277 = vadd.f32 %v1164, %v1276
      %1278 = vmatmul.f32.gmra.mxu0 %v857
      %v1279 = vpop.f32.mrf.mxu0
      %v1280 = vadd.f32 %v1167, %v1279
      %1281 = vmatmul.f32.gmra.mxu0 %v856
      %v1282 = vpop.f32.mrf.mxu0
      %v1283 = vadd.f32 %v1170, %v1282
      %1284 = vmatmul.f32.gmra.mxu0 %v855
      %v1285 = vpop.f32.mrf.mxu0
      %v1286 = vadd.f32 %v1173, %v1285
      %1287 = vmatmul.f32.gmra.mxu0 %v854
      %v1288 = vpop.f32.mrf.mxu0
      %v1289 = vadd.f32 %v1176, %v1288
      %1290 = vmatmul.f32.gmra.mxu0 %v853
      %v1291 = vpop.f32.mrf.mxu0
      %v1292 = vadd.f32 %v1179, %v1291
      %1293 = vdwg.mxu0
      %1294 = vmatpush.msra.mxu0 %v1067
      %1295 = vmatpush.msra.mxu0 %v1066
      %1296 = vmatpush.msra.mxu0 %v1065
      %1297 = vmatpush.msra.mxu0 %v1064
      %1298 = vmatpush.msra.mxu0 %v1063
      %1299 = vmatpush.msra.mxu0 %v1062
      %1300 = vmatpush.msra.mxu0 %v1061
      %1301 = vmatpush.msra.mxu0 %v1060
      %1302 = vmatpush.msra.mxu0 %v1059
      %1303 = vmatpush.msra.mxu0 %v1058
      %1304 = vmatpush.msra.mxu0 %v1057
      %1305 = vmatpush.msra.mxu0 %v1056
      %1306 = vmatpush.msra.mxu0 %v1055
      %1307 = vmatpush.msra.mxu0 %v1054
      %1308 = vmatpush.msra.mxu0 %v1053
      %1309 = vmatpush.msra.mxu0 %v1052
      %1310 = vmatmul.f32.gmra.mxu0 %v965
      %v1311 = vpop.f32.mrf.mxu0
      %v1312 = vadd.f32 %v1199, %v1311
      %1313 = vmatmul.f32.gmra.mxu0 %v964
      %v1314 = vpop.f32.mrf.mxu0
      %v1315 = vadd.f32 %v1202, %v1314
      %1316 = vmatmul.f32.gmra.mxu0 %v963
      %v1317 = vpop.f32.mrf.mxu0
      %v1318 = vadd.f32 %v1205, %v1317
      %1319 = vmatmul.f32.gmra.mxu0 %v962
      %v1320 = vpop.f32.mrf.mxu0
      %v1321 = vadd.f32 %v1208, %v1320
      %1322 = vmatmul.f32.gmra.mxu0 %v961
      %v1323 = vpop.f32.mrf.mxu0
      %v1324 = vadd.f32 %v1211, %v1323
      %1325 = vmatmul.f32.gmra.mxu0 %v960
      %v1326 = vpop.f32.mrf.mxu0
      %v1327 = vadd.f32 %v1214, %v1326
      %1328 = vmatmul.f32.gmra.mxu0 %v959
      %v1329 = vpop.f32.mrf.mxu0
      %v1330 = vadd.f32 %v1217, %v1329
      %1331 = vmatmul.f32.gmra.mxu0 %v958
      %v1332 = vpop.f32.mrf.mxu0
      %v1333 = vadd.f32 %v1220, %v1332
      %1334 = vmatmul.f32.gmra.mxu0 %v957
      %v1335 = vpop.f32.mrf.mxu0
      %v1336 = vadd.f32 %v1223, %v1335
      %1337 = vmatmul.f32.gmra.mxu0 %v956
      %v1338 = vpop.f32.mrf.mxu0
      %v1339 = vadd.f32 %v1226, %v1338
      %1340 = vmatmul.f32.gmra.mxu0 %v955
      %v1341 = vpop.f32.mrf.mxu0
      %v1342 = vadd.f32 %v1229, %v1341
      %1343 = vmatmul.f32.gmra.mxu0 %v954
      %v1344 = vpop.f32.mrf.mxu0
      %v1345 = vadd.f32 %v1232, %v1344
      %1346 = vmatmul.f32.gmra.mxu0 %v953
      %v1347 = vpop.f32.mrf.mxu0
      %v1348 = vadd.f32 %v1235, %v1347
      %1349 = vmatmul.f32.gmra.mxu0 %v952
      %v1350 = vpop.f32.mrf.mxu0
      %v1351 = vadd.f32 %v1238, %v1350
      %1352 = vmatmul.f32.gmra.mxu0 %v951
      %v1353 = vpop.f32.mrf.mxu0
      %v1354 = vadd.f32 %v1241, %v1353
      %1355 = vmatmul.f32.gmra.mxu0 %v950
      %v1356 = vpop.f32.mrf.mxu0
      %v1357 = vadd.f32 %v1244, %v1356
      %1358 = vmatmul.f32.gmra.mxu0 %v949
      %v1359 = vpop.f32.mrf.mxu0
      %v1360 = vadd.f32 %v1247, %v1359
      %1361 = vmatmul.f32.gmra.mxu0 %v948
      %v1362 = vpop.f32.mrf.mxu0
      %v1363 = vadd.f32 %v1250, %v1362
      %1364 = vmatmul.f32.gmra.mxu0 %v947
      %v1365 = vpop.f32.mrf.mxu0
      %v1366 = vadd.f32 %v1253, %v1365
      %1367 = vmatmul.f32.gmra.mxu0 %v946
      %v1368 = vpop.f32.mrf.mxu0
      %v1369 = vadd.f32 %v1256, %v1368
      %1370 = vmatmul.f32.gmra.mxu0 %v945
      %v1371 = vpop.f32.mrf.mxu0
      %v1372 = vadd.f32 %v1259, %v1371
      %1373 = vmatmul.f32.gmra.mxu0 %v944
      %v1374 = vpop.f32.mrf.mxu0
      %v1375 = vadd.f32 %v1262, %v1374
      %1376 = vmatmul.f32.gmra.mxu0 %v943
      %v1377 = vpop.f32.mrf.mxu0
      %v1378 = vadd.f32 %v1265, %v1377
      %1379 = vmatmul.f32.gmra.mxu0 %v942
      %v1380 = vpop.f32.mrf.mxu0
      %v1381 = vadd.f32 %v1268, %v1380
      %1382 = vmatmul.f32.gmra.mxu0 %v941
      %v1383 = vpop.f32.mrf.mxu0
      %v1384 = vadd.f32 %v1271, %v1383
      %1385 = vmatmul.f32.gmra.mxu0 %v940
      %v1386 = vpop.f32.mrf.mxu0
      %v1387 = vadd.f32 %v1274, %v1386
      %1388 = vmatmul.f32.gmra.mxu0 %v939
      %v1389 = vpop.f32.mrf.mxu0
      %v1390 = vadd.f32 %v1277, %v1389
      %1391 = vmatmul.f32.gmra.mxu0 %v938
      %v1392 = vpop.f32.mrf.mxu0
      %v1393 = vadd.f32 %v1280, %v1392
      %1394 = vmatmul.f32.gmra.mxu0 %v937
      %v1395 = vpop.f32.mrf.mxu0
      %v1396 = vadd.f32 %v1283, %v1395
      %1397 = vmatmul.f32.gmra.mxu0 %v936
      %v1398 = vpop.f32.mrf.mxu0
      %v1399 = vadd.f32 %v1286, %v1398
      %1400 = vmatmul.f32.gmra.mxu0 %v935
      %v1401 = vpop.f32.mrf.mxu0
      %v1402 = vadd.f32 %v1289, %v1401
      %1403 = vmatmul.f32.gmra.mxu0 %v934
      %v1404 = vpop.f32.mrf.mxu0
      %v1405 = vadd.f32 %v1292, %v1404
      %1406 = vdwg.mxu0
      %1407 = vmatpush.msra.mxu0 %v986
      %1408 = vmatpush.msra.mxu0 %v985
      %1409 = vmatpush.msra.mxu0 %v984
      %1410 = vmatpush.msra.mxu0 %v983
      %1411 = vmatpush.msra.mxu0 %v982
      %1412 = vmatpush.msra.mxu0 %v981
      %1413 = vmatpush.msra.mxu0 %v980
      %1414 = vmatpush.msra.mxu0 %v979
      %1415 = vmatpush.msra.mxu0 %v978
      %1416 = vmatpush.msra.mxu0 %v977
      %1417 = vmatpush.msra.mxu0 %v976
      %1418 = vmatpush.msra.mxu0 %v975
      %1419 = vmatpush.msra.mxu0 %v974
      %1420 = vmatpush.msra.mxu0 %v973
      %1421 = vmatpush.msra.mxu0 %v972
      %1422 = vmatpush.msra.mxu0 %v971
      %1423 = vmatmul.f32.gmra.mxu0 %v769
      %v1424 = vpop.f32.mrf.mxu0
      %v1425 = vadd.f32 %v1312, %v1424
      %1426 = vmatmul.f32.gmra.mxu0 %v770
      %v1427 = vpop.f32.mrf.mxu0
      %v1428 = vadd.f32 %v1315, %v1427
      %1429 = vmatmul.f32.gmra.mxu0 %v771
      %v1430 = vpop.f32.mrf.mxu0
      %v1431 = vadd.f32 %v1318, %v1430
      %1432 = vmatmul.f32.gmra.mxu0 %v772
      %v1433 = vpop.f32.mrf.mxu0
      %v1434 = vadd.f32 %v1321, %v1433
      %1435 = vmatmul.f32.gmra.mxu0 %v773
      %v1436 = vpop.f32.mrf.mxu0
      %v1437 = vadd.f32 %v1324, %v1436
      %1438 = vmatmul.f32.gmra.mxu0 %v774
      %v1439 = vpop.f32.mrf.mxu0
      %v1440 = vadd.f32 %v1327, %v1439
      %1441 = vmatmul.f32.gmra.mxu0 %v775
      %v1442 = vpop.f32.mrf.mxu0
      %v1443 = vadd.f32 %v1330, %v1442
      %1444 = vmatmul.f32.gmra.mxu0 %v776
      %v1445 = vpop.f32.mrf.mxu0
      %v1446 = vadd.f32 %v1333, %v1445
      %1447 = vmatmul.f32.gmra.mxu0 %v777
      %v1448 = vpop.f32.mrf.mxu0
      %v1449 = vadd.f32 %v1336, %v1448
      %1450 = vmatmul.f32.gmra.mxu0 %v778
      %v1451 = vpop.f32.mrf.mxu0
      %v1452 = vadd.f32 %v1339, %v1451
      %1453 = vmatmul.f32.gmra.mxu0 %v779
      %v1454 = vpop.f32.mrf.mxu0
      %v1455 = vadd.f32 %v1342, %v1454
      %1456 = vmatmul.f32.gmra.mxu0 %v780
      %v1457 = vpop.f32.mrf.mxu0
      %v1458 = vadd.f32 %v1345, %v1457
      %1459 = vmatmul.f32.gmra.mxu0 %v781
      %v1460 = vpop.f32.mrf.mxu0
      %v1461 = vadd.f32 %v1348, %v1460
      %1462 = vmatmul.f32.gmra.mxu0 %v782
      %v1463 = vpop.f32.mrf.mxu0
      %v1464 = vadd.f32 %v1351, %v1463
      %1465 = vmatmul.f32.gmra.mxu0 %v783
      %v1466 = vpop.f32.mrf.mxu0
      %v1467 = vadd.f32 %v1354, %v1466
      %1468 = vmatmul.f32.gmra.mxu0 %v784
      %v1469 = vpop.f32.mrf.mxu0
      %v1470 = vadd.f32 %v1357, %v1469
      %1471 = vmatmul.f32.gmra.mxu0 %v785
      %v1472 = vpop.f32.mrf.mxu0
      %v1473 = vadd.f32 %v1360, %v1472
      %1474 = vmatmul.f32.gmra.mxu0 %v786
      %v1475 = vpop.f32.mrf.mxu0
      %v1476 = vadd.f32 %v1363, %v1475
      %1477 = vmatmul.f32.gmra.mxu0 %v787
      %v1478 = vpop.f32.mrf.mxu0
      %v1479 = vadd.f32 %v1366, %v1478
      %1480 = vmatmul.f32.gmra.mxu0 %v788
      %v1481 = vpop.f32.mrf.mxu0
      %v1482 = vadd.f32 %v1369, %v1481
      %1483 = vmatmul.f32.gmra.mxu0 %v789
      %v1484 = vpop.f32.mrf.mxu0
      %v1485 = vadd.f32 %v1372, %v1484
      %1486 = vmatmul.f32.gmra.mxu0 %v790
      %v1487 = vpop.f32.mrf.mxu0
      %v1488 = vadd.f32 %v1375, %v1487
      %1489 = vmatmul.f32.gmra.mxu0 %v791
      %v1490 = vpop.f32.mrf.mxu0
      %v1491 = vadd.f32 %v1378, %v1490
      %1492 = vmatmul.f32.gmra.mxu0 %v792
      %v1493 = vpop.f32.mrf.mxu0
      %v1494 = vadd.f32 %v1381, %v1493
      %1495 = vmatmul.f32.gmra.mxu0 %v793
      %v1496 = vpop.f32.mrf.mxu0
      %v1497 = vadd.f32 %v1384, %v1496
      %1498 = vmatmul.f32.gmra.mxu0 %v794
      %v1499 = vpop.f32.mrf.mxu0
      %v1500 = vadd.f32 %v1387, %v1499
      %1501 = vmatmul.f32.gmra.mxu0 %v795
      %v1502 = vpop.f32.mrf.mxu0
      %v1503 = vadd.f32 %v1390, %v1502
      %1504 = vmatmul.f32.gmra.mxu0 %v796
      %v1505 = vpop.f32.mrf.mxu0
      %v1506 = vadd.f32 %v1393, %v1505
      %1507 = vmatmul.f32.gmra.mxu0 %v797
      %v1508 = vpop.f32.mrf.mxu0
      %v1509 = vadd.f32 %v1396, %v1508
      %1510 = vmatmul.f32.gmra.mxu0 %v798
      %v1511 = vpop.f32.mrf.mxu0
      %v1512 = vadd.f32 %v1399, %v1511
      %1513 = vmatmul.f32.gmra.mxu0 %v799
      %v1514 = vpop.f32.mrf.mxu0
      %v1515 = vadd.f32 %v1402, %v1514
      %1516 = vmatmul.f32.gmra.mxu0 %v800
      %v1517 = vpop.f32.mrf.mxu0
      %v1518 = vadd.f32 %v1405, %v1517
      %1519 = vdwg.mxu0
      %1520 = vmatpush.msra.mxu0 %v1002
      %1521 = vmatpush.msra.mxu0 %v1001
      %1522 = vmatpush.msra.mxu0 %v1000
      %1523 = vmatpush.msra.mxu0 %v999
      %1524 = vmatpush.msra.mxu0 %v998
      %1525 = vmatpush.msra.mxu0 %v997
      %1526 = vmatpush.msra.mxu0 %v996
      %1527 = vmatpush.msra.mxu0 %v995
      %1528 = vmatpush.msra.mxu0 %v994
      %1529 = vmatpush.msra.mxu0 %v993
      %1530 = vmatpush.msra.mxu0 %v992
      %1531 = vmatpush.msra.mxu0 %v991
      %1532 = vmatpush.msra.mxu0 %v990
      %1533 = vmatpush.msra.mxu0 %v989
      %1534 = vmatpush.msra.mxu0 %v988
      %1535 = vmatpush.msra.mxu0 %v987
      %1536 = vmatmul.f32.gmra.mxu0 %v888
      %v1537 = vpop.f32.mrf.mxu0
      %v1538 = vadd.f32 %v1425, %v1537
      %1539 = vmatmul.f32.gmra.mxu0 %v887
      %v1540 = vpop.f32.mrf.mxu0
      %v1541 = vadd.f32 %v1428, %v1540
      %1542 = vmatmul.f32.gmra.mxu0 %v886
      %v1543 = vpop.f32.mrf.mxu0
      %v1544 = vadd.f32 %v1431, %v1543
      %1545 = vmatmul.f32.gmra.mxu0 %v885
      %v1546 = vpop.f32.mrf.mxu0
      %v1547 = vadd.f32 %v1434, %v1546
      %1548 = vmatmul.f32.gmra.mxu0 %v884
      %v1549 = vpop.f32.mrf.mxu0
      %v1550 = vadd.f32 %v1437, %v1549
      %1551 = vmatmul.f32.gmra.mxu0 %v883
      %v1552 = vpop.f32.mrf.mxu0
      %v1553 = vadd.f32 %v1440, %v1552
      %1554 = vmatmul.f32.gmra.mxu0 %v882
      %v1555 = vpop.f32.mrf.mxu0
      %v1556 = vadd.f32 %v1443, %v1555
      %1557 = vmatmul.f32.gmra.mxu0 %v881
      %v1558 = vpop.f32.mrf.mxu0
      %v1559 = vadd.f32 %v1446, %v1558
      %1560 = vmatmul.f32.gmra.mxu0 %v880
      %v1561 = vpop.f32.mrf.mxu0
      %v1562 = vadd.f32 %v1449, %v1561
      %1563 = vmatmul.f32.gmra.mxu0 %v879
      %v1564 = vpop.f32.mrf.mxu0
      %v1565 = vadd.f32 %v1452, %v1564
      %1566 = vmatmul.f32.gmra.mxu0 %v878
      %v1567 = vpop.f32.mrf.mxu0
      %v1568 = vadd.f32 %v1455, %v1567
      %1569 = vmatmul.f32.gmra.mxu0 %v877
      %v1570 = vpop.f32.mrf.mxu0
      %v1571 = vadd.f32 %v1458, %v1570
      %1572 = vmatmul.f32.gmra.mxu0 %v876
      %v1573 = vpop.f32.mrf.mxu0
      %v1574 = vadd.f32 %v1461, %v1573
      %1575 = vmatmul.f32.gmra.mxu0 %v875
      %v1576 = vpop.f32.mrf.mxu0
      %v1577 = vadd.f32 %v1464, %v1576
      %1578 = vmatmul.f32.gmra.mxu0 %v874
      %v1579 = vpop.f32.mrf.mxu0
      %v1580 = vadd.f32 %v1467, %v1579
      %1581 = vmatmul.f32.gmra.mxu0 %v873
      %v1582 = vpop.f32.mrf.mxu0
      %v1583 = vadd.f32 %v1470, %v1582
      %1584 = vmatmul.f32.gmra.mxu0 %v872
      %v1585 = vpop.f32.mrf.mxu0
      %v1586 = vadd.f32 %v1473, %v1585
      %1587 = vmatmul.f32.gmra.mxu0 %v871
      %v1588 = vpop.f32.mrf.mxu0
      %v1589 = vadd.f32 %v1476, %v1588
      %1590 = vmatmul.f32.gmra.mxu0 %v870
      %v1591 = vpop.f32.mrf.mxu0
      %v1592 = vadd.f32 %v1479, %v1591
      %1593 = vmatmul.f32.gmra.mxu0 %v869
      %v1594 = vpop.f32.mrf.mxu0
      %v1595 = vadd.f32 %v1482, %v1594
      %1596 = vmatmul.f32.gmra.mxu0 %v868
      %v1597 = vpop.f32.mrf.mxu0
      %v1598 = vadd.f32 %v1485, %v1597
      %1599 = vmatmul.f32.gmra.mxu0 %v867
      %v1600 = vpop.f32.mrf.mxu0
      %v1601 = vadd.f32 %v1488, %v1600
      %1602 = vmatmul.f32.gmra.mxu0 %v866
      %v1603 = vpop.f32.mrf.mxu0
      %v1604 = vadd.f32 %v1491, %v1603
      %1605 = vmatmul.f32.gmra.mxu0 %v865
      %v1606 = vpop.f32.mrf.mxu0
      %v1607 = vadd.f32 %v1494, %v1606
      %1608 = vmatmul.f32.gmra.mxu0 %v864
      %v1609 = vpop.f32.mrf.mxu0
      %v1610 = vadd.f32 %v1497, %v1609
      %1611 = vmatmul.f32.gmra.mxu0 %v863
      %v1612 = vpop.f32.mrf.mxu0
      %v1613 = vadd.f32 %v1500, %v1612
      %1614 = vmatmul.f32.gmra.mxu0 %v862
      %v1615 = vpop.f32.mrf.mxu0
      %v1616 = vadd.f32 %v1503, %v1615
      %1617 = vmatmul.f32.gmra.mxu0 %v861
      %v1618 = vpop.f32.mrf.mxu0
      %v1619 = vadd.f32 %v1506, %v1618
      %1620 = vmatmul.f32.gmra.mxu0 %v860
      %v1621 = vpop.f32.mrf.mxu0
      %v1622 = vadd.f32 %v1509, %v1621
      %1623 = vmatmul.f32.gmra.mxu0 %v859
      %v1624 = vpop.f32.mrf.mxu0
      %v1625 = vadd.f32 %v1512, %v1624
      %1626 = vmatmul.f32.gmra.mxu0 %v858
      %v1627 = vpop.f32.mrf.mxu0
      %v1628 = vadd.f32 %v1515, %v1627
      %1629 = vmatmul.f32.gmra.mxu0 %v857
      %v1630 = vpop.f32.mrf.mxu0
      %v1631 = vadd.f32 %v1518, %v1630
      %1632 = vdwg.mxu0
      %1633 = vmatpush.msra.mxu0 %v1018
      %1634 = vmatpush.msra.mxu0 %v1017
      %1635 = vmatpush.msra.mxu0 %v1016
      %1636 = vmatpush.msra.mxu0 %v1015
      %1637 = vmatpush.msra.mxu0 %v1014
      %1638 = vmatpush.msra.mxu0 %v1013
      %1639 = vmatpush.msra.mxu0 %v1012
      %1640 = vmatpush.msra.mxu0 %v1011
      %1641 = vmatpush.msra.mxu0 %v1010
      %1642 = vmatpush.msra.mxu0 %v1009
      %1643 = vmatpush.msra.mxu0 %v1008
      %1644 = vmatpush.msra.mxu0 %v1007
      %1645 = vmatpush.msra.mxu0 %v1006
      %1646 = vmatpush.msra.mxu0 %v1005
      %1647 = vmatpush.msra.mxu0 %v1004
      %1648 = vmatpush.msra.mxu0 %v1003
      %1649 = vmatmul.f32.gmra.mxu0 %v969
      %v1650 = vpop.f32.mrf.mxu0
      %v1651 = vadd.f32 %v1538, %v1650
      %1652 = vmatmul.f32.gmra.mxu0 %v968
      %v1653 = vpop.f32.mrf.mxu0
      %v1654 = vadd.f32 %v1541, %v1653
      %1655 = vmatmul.f32.gmra.mxu0 %v967
      %v1656 = vpop.f32.mrf.mxu0
      %v1657 = vadd.f32 %v1544, %v1656
      %1658 = vmatmul.f32.gmra.mxu0 %v966
      %v1659 = vpop.f32.mrf.mxu0
      %v1660 = vadd.f32 %v1547, %v1659
      %1661 = vmatmul.f32.gmra.mxu0 %v965
      %v1662 = vpop.f32.mrf.mxu0
      %v1663 = vadd.f32 %v1550, %v1662
      %1664 = vmatmul.f32.gmra.mxu0 %v964
      %v1665 = vpop.f32.mrf.mxu0
      %v1666 = vadd.f32 %v1553, %v1665
      %1667 = vmatmul.f32.gmra.mxu0 %v963
      %v1668 = vpop.f32.mrf.mxu0
      %v1669 = vadd.f32 %v1556, %v1668
      %1670 = vmatmul.f32.gmra.mxu0 %v962
      %v1671 = vpop.f32.mrf.mxu0
      %v1672 = vadd.f32 %v1559, %v1671
      %1673 = vmatmul.f32.gmra.mxu0 %v961
      %v1674 = vpop.f32.mrf.mxu0
      %v1675 = vadd.f32 %v1562, %v1674
      %1676 = vmatmul.f32.gmra.mxu0 %v960
      %v1677 = vpop.f32.mrf.mxu0
      %v1678 = vadd.f32 %v1565, %v1677
      %1679 = vmatmul.f32.gmra.mxu0 %v959
      %v1680 = vpop.f32.mrf.mxu0
      %v1681 = vadd.f32 %v1568, %v1680
      %1682 = vmatmul.f32.gmra.mxu0 %v958
      %v1683 = vpop.f32.mrf.mxu0
      %v1684 = vadd.f32 %v1571, %v1683
      %1685 = vmatmul.f32.gmra.mxu0 %v957
      %v1686 = vpop.f32.mrf.mxu0
      %v1687 = vadd.f32 %v1574, %v1686
      %1688 = vmatmul.f32.gmra.mxu0 %v956
      %v1689 = vpop.f32.mrf.mxu0
      %v1690 = vadd.f32 %v1577, %v1689
      %1691 = vmatmul.f32.gmra.mxu0 %v955
      %v1692 = vpop.f32.mrf.mxu0
      %v1693 = vadd.f32 %v1580, %v1692
      %1694 = vmatmul.f32.gmra.mxu0 %v954
      %v1695 = vpop.f32.mrf.mxu0
      %v1696 = vadd.f32 %v1583, %v1695
      %1697 = vmatmul.f32.gmra.mxu0 %v953
      %v1698 = vpop.f32.mrf.mxu0
      %v1699 = vadd.f32 %v1586, %v1698
      %1700 = vmatmul.f32.gmra.mxu0 %v952
      %v1701 = vpop.f32.mrf.mxu0
      %v1702 = vadd.f32 %v1589, %v1701
      %1703 = vmatmul.f32.gmra.mxu0 %v951
      %v1704 = vpop.f32.mrf.mxu0
      %v1705 = vadd.f32 %v1592, %v1704
      %1706 = vmatmul.f32.gmra.mxu0 %v950
      %v1707 = vpop.f32.mrf.mxu0
      %v1708 = vadd.f32 %v1595, %v1707
      %1709 = vmatmul.f32.gmra.mxu0 %v949
      %v1710 = vpop.f32.mrf.mxu0
      %v1711 = vadd.f32 %v1598, %v1710
      %1712 = vmatmul.f32.gmra.mxu0 %v948
      %v1713 = vpop.f32.mrf.mxu0
      %v1714 = vadd.f32 %v1601, %v1713
      %1715 = vmatmul.f32.gmra.mxu0 %v947
      %v1716 = vpop.f32.mrf.mxu0
      %v1717 = vadd.f32 %v1604, %v1716
      %1718 = vmatmul.f32.gmra.mxu0 %v946
      %v1719 = vpop.f32.mrf.mxu0
      %v1720 = vadd.f32 %v1607, %v1719
      %1721 = vmatmul.f32.gmra.mxu0 %v945
      %v1722 = vpop.f32.mrf.mxu0
      %v1723 = vadd.f32 %v1610, %v1722
      %1724 = vmatmul.f32.gmra.mxu0 %v944
      %v1725 = vpop.f32.mrf.mxu0
      %v1726 = vadd.f32 %v1613, %v1725
      %1727 = vmatmul.f32.gmra.mxu0 %v943
      %v1728 = vpop.f32.mrf.mxu0
      %v1729 = vadd.f32 %v1616, %v1728
      %1730 = vmatmul.f32.gmra.mxu0 %v942
      %v1731 = vpop.f32.mrf.mxu0
      %v1732 = vadd.f32 %v1619, %v1731
      %1733 = vmatmul.f32.gmra.mxu0 %v941
      %v1734 = vpop.f32.mrf.mxu0
      %v1735 = vadd.f32 %v1622, %v1734
      %1736 = vmatmul.f32.gmra.mxu0 %v940
      %v1737 = vpop.f32.mrf.mxu0
      %v1738 = vadd.f32 %v1625, %v1737
      %1739 = vmatmul.f32.gmra.mxu0 %v939
      %v1740 = vpop.f32.mrf.mxu0
      %v1741 = vadd.f32 %v1628, %v1740
      %1742 = vmatmul.f32.gmra.mxu0 %v938
      %v1743 = vpop.f32.mrf.mxu0
      %v1744 = vadd.f32 %v1631, %v1743
      %1745 = vdwg.mxu0
      %s1746 = scalar_lea.vmem %s3, 768
      %v1747 = vld [vmem:[%s1746] sm:$0xff]
      %v1748 = vld [vmem:[%s1746 + $0x8] sm:$0xff]
      %v1749 = vld [vmem:[%s1746 + $0x10] sm:$0xff]
      %v1750 = vld [vmem:[%s1746 + $0x18] sm:$0xff]
      %v1751 = vld [vmem:[%s1746 + $0x20] sm:$0xff]
      %v1752 = vld [vmem:[%s1746 + $0x28] sm:$0xff]
      %v1753 = vld [vmem:[%s1746 + $0x30] sm:$0xff]
      %v1754 = vld [vmem:[%s1746 + $0x38] sm:$0xff]
      %v1755 = vld [vmem:[%s1746 + $0x40] sm:$0xff]
      %v1756 = vld [vmem:[%s1746 + $0x48] sm:$0xff]
      %v1757 = vld [vmem:[%s1746 + $0x50] sm:$0xff]
      %v1758 = vld [vmem:[%s1746 + $0x58] sm:$0xff]
      %v1759 = vld [vmem:[%s1746 + $0x60] sm:$0xff]
      %v1760 = vld [vmem:[%s1746 + $0x68] sm:$0xff]
      %v1761 = vld [vmem:[%s1746 + $0x70] sm:$0xff]
      %v1762 = vld [vmem:[%s1746 + $0x78] sm:$0xff]
      %v1763 = vld [vmem:[%s1746 + $0x80] sm:$0xff]
      %v1764 = vld [vmem:[%s1746 + $0x88] sm:$0xff]
      %v1765 = vld [vmem:[%s1746 + $0x90] sm:$0xff]
      %v1766 = vld [vmem:[%s1746 + $0x98] sm:$0xff]
      %v1767 = vld [vmem:[%s1746 + $0xa0] sm:$0xff]
      %v1768 = vld [vmem:[%s1746 + $0xa8] sm:$0xff]
      %v1769 = vld [vmem:[%s1746 + $0xb0] sm:$0xff]
      %v1770 = vld [vmem:[%s1746 + $0xb8] sm:$0xff]
      %v1771 = vld [vmem:[%s1746 + $0xc0] sm:$0xff]
      %v1772 = vld [vmem:[%s1746 + $0xc8] sm:$0xff]
      %v1773 = vld [vmem:[%s1746 + $0xd0] sm:$0xff]
      %v1774 = vld [vmem:[%s1746 + $0xd8] sm:$0xff]
      %v1775 = vld [vmem:[%s1746 + $0xe0] sm:$0xff]
      %v1776 = vld [vmem:[%s1746 + $0xe8] sm:$0xff]
      %v1777 = vld [vmem:[%s1746 + $0xf0] sm:$0xff]
      %v1778 = vld [vmem:[%s1746 + $0xf8] sm:$0xff]
      %v1779 = vld [vmem:[%s1746 + $0x100] sm:$0xff]
      %v1780 = vld [vmem:[%s1746 + $0x108] sm:$0xff]
      %v1781 = vld [vmem:[%s1746 + $0x110] sm:$0xff]
      %v1782 = vld [vmem:[%s1746 + $0x118] sm:$0xff]
      %v1783 = vld [vmem:[%s1746 + $0x120] sm:$0xff]
      %v1784 = vld [vmem:[%s1746 + $0x128] sm:$0xff]
      %v1785 = vld [vmem:[%s1746 + $0x130] sm:$0xff]
      %v1786 = vld [vmem:[%s1746 + $0x138] sm:$0xff]
      %v1787 = vld [vmem:[%s1746 + $0x140] sm:$0xff]
      %v1788 = vld [vmem:[%s1746 + $0x148] sm:$0xff]
      %v1789 = vld [vmem:[%s1746 + $0x150] sm:$0xff]
      %v1790 = vld [vmem:[%s1746 + $0x158] sm:$0xff]
      %v1791 = vld [vmem:[%s1746 + $0x160] sm:$0xff]
      %v1792 = vld [vmem:[%s1746 + $0x168] sm:$0xff]
      %v1793 = vld [vmem:[%s1746 + $0x170] sm:$0xff]
      %v1794 = vld [vmem:[%s1746 + $0x178] sm:$0xff]
      %1795 = vmatpush.msra.mxu0 %v1762
      %1796 = vmatpush.msra.mxu0 %v1761
      %1797 = vmatpush.msra.mxu0 %v1760
      %1798 = vmatpush.msra.mxu0 %v1759
      %1799 = vmatpush.msra.mxu0 %v1758
      %1800 = vmatpush.msra.mxu0 %v1757
      %1801 = vmatpush.msra.mxu0 %v1756
      %1802 = vmatpush.msra.mxu0 %v1755
      %1803 = vmatpush.msra.mxu0 %v1754
      %1804 = vmatpush.msra.mxu0 %v1753
      %1805 = vmatpush.msra.mxu0 %v1752
      %1806 = vmatpush.msra.mxu0 %v1751
      %1807 = vmatpush.msra.mxu0 %v1750
      %1808 = vmatpush.msra.mxu0 %v1749
      %1809 = vmatpush.msra.mxu0 %v1748
      %1810 = vmatpush.msra.mxu0 %v1747
      %1811 = vmatmul.f32.gmra.mxu0 %v777
      %v1812 = vpop.f32.mrf.mxu0
      %v1813 = vadd.f32 0.0, %v1812
      %1814 = vmatmul.f32.gmra.mxu0 %v778
      %v1815 = vpop.f32.mrf.mxu0
      %v1816 = vadd.f32 0.0, %v1815
      %1817 = vmatmul.f32.gmra.mxu0 %v779
      %v1818 = vpop.f32.mrf.mxu0
      %v1819 = vadd.f32 0.0, %v1818
      %1820 = vmatmul.f32.gmra.mxu0 %v780
      %v1821 = vpop.f32.mrf.mxu0
      %v1822 = vadd.f32 0.0, %v1821
      %1823 = vmatmul.f32.gmra.mxu0 %v781
      %v1824 = vpop.f32.mrf.mxu0
      %v1825 = vadd.f32 0.0, %v1824
      %1826 = vmatmul.f32.gmra.mxu0 %v782
      %v1827 = vpop.f32.mrf.mxu0
      %v1828 = vadd.f32 0.0, %v1827
      %1829 = vmatmul.f32.gmra.mxu0 %v783
      %v1830 = vpop.f32.mrf.mxu0
      %v1831 = vadd.f32 0.0, %v1830
      %1832 = vmatmul.f32.gmra.mxu0 %v784
      %v1833 = vpop.f32.mrf.mxu0
      %v1834 = vadd.f32 0.0, %v1833
      %1835 = vmatmul.f32.gmra.mxu0 %v785
      %v1836 = vpop.f32.mrf.mxu0
      %v1837 = vadd.f32 0.0, %v1836
      %1838 = vmatmul.f32.gmra.mxu0 %v786
      %v1839 = vpop.f32.mrf.mxu0
      %v1840 = vadd.f32 0.0, %v1839
      %1841 = vmatmul.f32.gmra.mxu0 %v787
      %v1842 = vpop.f32.mrf.mxu0
      %v1843 = vadd.f32 0.0, %v1842
      %1844 = vmatmul.f32.gmra.mxu0 %v788
      %v1845 = vpop.f32.mrf.mxu0
      %v1846 = vadd.f32 0.0, %v1845
      %1847 = vmatmul.f32.gmra.mxu0 %v789
      %v1848 = vpop.f32.mrf.mxu0
      %v1849 = vadd.f32 0.0, %v1848
      %1850 = vmatmul.f32.gmra.mxu0 %v790
      %v1851 = vpop.f32.mrf.mxu0
      %v1852 = vadd.f32 0.0, %v1851
      %1853 = vmatmul.f32.gmra.mxu0 %v791
      %v1854 = vpop.f32.mrf.mxu0
      %v1855 = vadd.f32 0.0, %v1854
      %1856 = vmatmul.f32.gmra.mxu0 %v792
      %v1857 = vpop.f32.mrf.mxu0
      %v1858 = vadd.f32 0.0, %v1857
      %1859 = vmatmul.f32.gmra.mxu0 %v793
      %v1860 = vpop.f32.mrf.mxu0
      %v1861 = vadd.f32 0.0, %v1860
      %1862 = vmatmul.f32.gmra.mxu0 %v794
      %v1863 = vpop.f32.mrf.mxu0
      %v1864 = vadd.f32 0.0, %v1863
      %1865 = vmatmul.f32.gmra.mxu0 %v795
      %v1866 = vpop.f32.mrf.mxu0
      %v1867 = vadd.f32 0.0, %v1866
      %1868 = vmatmul.f32.gmra.mxu0 %v796
      %v1869 = vpop.f32.mrf.mxu0
      %v1870 = vadd.f32 0.0, %v1869
      %1871 = vmatmul.f32.gmra.mxu0 %v797
      %v1872 = vpop.f32.mrf.mxu0
      %v1873 = vadd.f32 0.0, %v1872
      %1874 = vmatmul.f32.gmra.mxu0 %v798
      %v1875 = vpop.f32.mrf.mxu0
      %v1876 = vadd.f32 0.0, %v1875
      %1877 = vmatmul.f32.gmra.mxu0 %v799
      %v1878 = vpop.f32.mrf.mxu0
      %v1879 = vadd.f32 0.0, %v1878
      %1880 = vmatmul.f32.gmra.mxu0 %v800
      %v1881 = vpop.f32.mrf.mxu0
      %v1882 = vadd.f32 0.0, %v1881
      %1883 = vmatmul.f32.gmra.mxu0 %v801
      %v1884 = vpop.f32.mrf.mxu0
      %v1885 = vadd.f32 0.0, %v1884
      %1886 = vmatmul.f32.gmra.mxu0 %v802
      %v1887 = vpop.f32.mrf.mxu0
      %v1888 = vadd.f32 0.0, %v1887
      %1889 = vmatmul.f32.gmra.mxu0 %v803
      %v1890 = vpop.f32.mrf.mxu0
      %v1891 = vadd.f32 0.0, %v1890
      %1892 = vmatmul.f32.gmra.mxu0 %v804
      %v1893 = vpop.f32.mrf.mxu0
      %v1894 = vadd.f32 0.0, %v1893
      %1895 = vmatmul.f32.gmra.mxu0 %v805
      %v1896 = vpop.f32.mrf.mxu0
      %v1897 = vadd.f32 0.0, %v1896
      %1898 = vmatmul.f32.gmra.mxu0 %v806
      %v1899 = vpop.f32.mrf.mxu0
      %v1900 = vadd.f32 0.0, %v1899
      %1901 = vmatmul.f32.gmra.mxu0 %v807
      %v1902 = vpop.f32.mrf.mxu0
      %v1903 = vadd.f32 0.0, %v1902
      %1904 = vmatmul.f32.gmra.mxu0 %v808
      %v1905 = vpop.f32.mrf.mxu0
      %v1906 = vadd.f32 0.0, %v1905
      %1907 = vdwg.mxu0
      %1908 = vmatpush.msra.mxu0 %v1778
      %1909 = vmatpush.msra.mxu0 %v1777
      %1910 = vmatpush.msra.mxu0 %v1776
      %1911 = vmatpush.msra.mxu0 %v1775
      %1912 = vmatpush.msra.mxu0 %v1774
      %1913 = vmatpush.msra.mxu0 %v1773
      %1914 = vmatpush.msra.mxu0 %v1772
      %1915 = vmatpush.msra.mxu0 %v1771
      %1916 = vmatpush.msra.mxu0 %v1770
      %1917 = vmatpush.msra.mxu0 %v1769
      %1918 = vmatpush.msra.mxu0 %v1768
      %1919 = vmatpush.msra.mxu0 %v1767
      %1920 = vmatpush.msra.mxu0 %v1766
      %1921 = vmatpush.msra.mxu0 %v1765
      %1922 = vmatpush.msra.mxu0 %v1764
      %1923 = vmatpush.msra.mxu0 %v1763
      %1924 = vmatmul.f32.gmra.mxu0 %v880
      %v1925 = vpop.f32.mrf.mxu0
      %v1926 = vadd.f32 %v1813, %v1925
      %1927 = vmatmul.f32.gmra.mxu0 %v879
      %v1928 = vpop.f32.mrf.mxu0
      %v1929 = vadd.f32 %v1816, %v1928
      %1930 = vmatmul.f32.gmra.mxu0 %v878
      %v1931 = vpop.f32.mrf.mxu0
      %v1932 = vadd.f32 %v1819, %v1931
      %1933 = vmatmul.f32.gmra.mxu0 %v877
      %v1934 = vpop.f32.mrf.mxu0
      %v1935 = vadd.f32 %v1822, %v1934
      %1936 = vmatmul.f32.gmra.mxu0 %v876
      %v1937 = vpop.f32.mrf.mxu0
      %v1938 = vadd.f32 %v1825, %v1937
      %1939 = vmatmul.f32.gmra.mxu0 %v875
      %v1940 = vpop.f32.mrf.mxu0
      %v1941 = vadd.f32 %v1828, %v1940
      %1942 = vmatmul.f32.gmra.mxu0 %v874
      %v1943 = vpop.f32.mrf.mxu0
      %v1944 = vadd.f32 %v1831, %v1943
      %1945 = vmatmul.f32.gmra.mxu0 %v873
      %v1946 = vpop.f32.mrf.mxu0
      %v1947 = vadd.f32 %v1834, %v1946
      %1948 = vmatmul.f32.gmra.mxu0 %v872
      %v1949 = vpop.f32.mrf.mxu0
      %v1950 = vadd.f32 %v1837, %v1949
      %1951 = vmatmul.f32.gmra.mxu0 %v871
      %v1952 = vpop.f32.mrf.mxu0
      %v1953 = vadd.f32 %v1840, %v1952
      %1954 = vmatmul.f32.gmra.mxu0 %v870
      %v1955 = vpop.f32.mrf.mxu0
      %v1956 = vadd.f32 %v1843, %v1955
      %1957 = vmatmul.f32.gmra.mxu0 %v869
      %v1958 = vpop.f32.mrf.mxu0
      %v1959 = vadd.f32 %v1846, %v1958
      %1960 = vmatmul.f32.gmra.mxu0 %v868
      %v1961 = vpop.f32.mrf.mxu0
      %v1962 = vadd.f32 %v1849, %v1961
      %1963 = vmatmul.f32.gmra.mxu0 %v867
      %v1964 = vpop.f32.mrf.mxu0
      %v1965 = vadd.f32 %v1852, %v1964
      %1966 = vmatmul.f32.gmra.mxu0 %v866
      %v1967 = vpop.f32.mrf.mxu0
      %v1968 = vadd.f32 %v1855, %v1967
      %1969 = vmatmul.f32.gmra.mxu0 %v865
      %v1970 = vpop.f32.mrf.mxu0
      %v1971 = vadd.f32 %v1858, %v1970
      %1972 = vmatmul.f32.gmra.mxu0 %v864
      %v1973 = vpop.f32.mrf.mxu0
      %v1974 = vadd.f32 %v1861, %v1973
      %1975 = vmatmul.f32.gmra.mxu0 %v863
      %v1976 = vpop.f32.mrf.mxu0
      %v1977 = vadd.f32 %v1864, %v1976
      %1978 = vmatmul.f32.gmra.mxu0 %v862
      %v1979 = vpop.f32.mrf.mxu0
      %v1980 = vadd.f32 %v1867, %v1979
      %1981 = vmatmul.f32.gmra.mxu0 %v861
      %v1982 = vpop.f32.mrf.mxu0
      %v1983 = vadd.f32 %v1870, %v1982
      %1984 = vmatmul.f32.gmra.mxu0 %v860
      %v1985 = vpop.f32.mrf.mxu0
      %v1986 = vadd.f32 %v1873, %v1985
      %1987 = vmatmul.f32.gmra.mxu0 %v859
      %v1988 = vpop.f32.mrf.mxu0
      %v1989 = vadd.f32 %v1876, %v1988
      %1990 = vmatmul.f32.gmra.mxu0 %v858
      %v1991 = vpop.f32.mrf.mxu0
      %v1992 = vadd.f32 %v1879, %v1991
      %1993 = vmatmul.f32.gmra.mxu0 %v857
      %v1994 = vpop.f32.mrf.mxu0
      %v1995 = vadd.f32 %v1882, %v1994
      %1996 = vmatmul.f32.gmra.mxu0 %v856
      %v1997 = vpop.f32.mrf.mxu0
      %v1998 = vadd.f32 %v1885, %v1997
      %1999 = vmatmul.f32.gmra.mxu0 %v855
      %v2000 = vpop.f32.mrf.mxu0
      %v2001 = vadd.f32 %v1888, %v2000
      %2002 = vmatmul.f32.gmra.mxu0 %v854
      %v2003 = vpop.f32.mrf.mxu0
      %v2004 = vadd.f32 %v1891, %v2003
      %2005 = vmatmul.f32.gmra.mxu0 %v853
      %v2006 = vpop.f32.mrf.mxu0
      %v2007 = vadd.f32 %v1894, %v2006
      %2008 = vmatmul.f32.gmra.mxu0 %v852
      %v2009 = vpop.f32.mrf.mxu0
      %v2010 = vadd.f32 %v1897, %v2009
      %2011 = vmatmul.f32.gmra.mxu0 %v851
      %v2012 = vpop.f32.mrf.mxu0
      %v2013 = vadd.f32 %v1900, %v2012
      %2014 = vmatmul.f32.gmra.mxu0 %v850
      %v2015 = vpop.f32.mrf.mxu0
      %v2016 = vadd.f32 %v1903, %v2015
      %2017 = vmatmul.f32.gmra.mxu0 %v889
      %v2018 = vpop.f32.mrf.mxu0
      %v2019 = vadd.f32 %v1906, %v2018
      %2020 = vdwg.mxu0
      %2021 = vmatpush.msra.mxu0 %v1794
      %2022 = vmatpush.msra.mxu0 %v1793
      %2023 = vmatpush.msra.mxu0 %v1792
      %2024 = vmatpush.msra.mxu0 %v1791
      %2025 = vmatpush.msra.mxu0 %v1790
      %2026 = vmatpush.msra.mxu0 %v1789
      %2027 = vmatpush.msra.mxu0 %v1788
      %2028 = vmatpush.msra.mxu0 %v1787
      %2029 = vmatpush.msra.mxu0 %v1786
      %2030 = vmatpush.msra.mxu0 %v1785
      %2031 = vmatpush.msra.mxu0 %v1784
      %2032 = vmatpush.msra.mxu0 %v1783
      %2033 = vmatpush.msra.mxu0 %v1782
      %2034 = vmatpush.msra.mxu0 %v1781
      %2035 = vmatpush.msra.mxu0 %v1780
      %2036 = vmatpush.msra.mxu0 %v1779
      %2037 = vmatmul.f32.gmra.mxu0 %v961
      %v2038 = vpop.f32.mrf.mxu0
      %v2039 = vadd.f32 %v1926, %v2038
      %2040 = vmatmul.f32.gmra.mxu0 %v960
      %v2041 = vpop.f32.mrf.mxu0
      %v2042 = vadd.f32 %v1929, %v2041
      %2043 = vmatmul.f32.gmra.mxu0 %v959
      %v2044 = vpop.f32.mrf.mxu0
      %v2045 = vadd.f32 %v1932, %v2044
      %2046 = vmatmul.f32.gmra.mxu0 %v958
      %v2047 = vpop.f32.mrf.mxu0
      %v2048 = vadd.f32 %v1935, %v2047
      %2049 = vmatmul.f32.gmra.mxu0 %v957
      %v2050 = vpop.f32.mrf.mxu0
      %v2051 = vadd.f32 %v1938, %v2050
      %2052 = vmatmul.f32.gmra.mxu0 %v956
      %v2053 = vpop.f32.mrf.mxu0
      %v2054 = vadd.f32 %v1941, %v2053
      %2055 = vmatmul.f32.gmra.mxu0 %v955
      %v2056 = vpop.f32.mrf.mxu0
      %v2057 = vadd.f32 %v1944, %v2056
      %2058 = vmatmul.f32.gmra.mxu0 %v954
      %v2059 = vpop.f32.mrf.mxu0
      %v2060 = vadd.f32 %v1947, %v2059
      %2061 = vmatmul.f32.gmra.mxu0 %v953
      %v2062 = vpop.f32.mrf.mxu0
      %v2063 = vadd.f32 %v1950, %v2062
      %2064 = vmatmul.f32.gmra.mxu0 %v952
      %v2065 = vpop.f32.mrf.mxu0
      %v2066 = vadd.f32 %v1953, %v2065
      %2067 = vmatmul.f32.gmra.mxu0 %v951
      %v2068 = vpop.f32.mrf.mxu0
      %v2069 = vadd.f32 %v1956, %v2068
      %2070 = vmatmul.f32.gmra.mxu0 %v950
      %v2071 = vpop.f32.mrf.mxu0
      %v2072 = vadd.f32 %v1959, %v2071
      %2073 = vmatmul.f32.gmra.mxu0 %v949
      %v2074 = vpop.f32.mrf.mxu0
      %v2075 = vadd.f32 %v1962, %v2074
      %2076 = vmatmul.f32.gmra.mxu0 %v948
      %v2077 = vpop.f32.mrf.mxu0
      %v2078 = vadd.f32 %v1965, %v2077
      %2079 = vmatmul.f32.gmra.mxu0 %v947
      %v2080 = vpop.f32.mrf.mxu0
      %v2081 = vadd.f32 %v1968, %v2080
      %2082 = vmatmul.f32.gmra.mxu0 %v946
      %v2083 = vpop.f32.mrf.mxu0
      %v2084 = vadd.f32 %v1971, %v2083
      %2085 = vmatmul.f32.gmra.mxu0 %v945
      %v2086 = vpop.f32.mrf.mxu0
      %v2087 = vadd.f32 %v1974, %v2086
      %2088 = vmatmul.f32.gmra.mxu0 %v944
      %v2089 = vpop.f32.mrf.mxu0
      %v2090 = vadd.f32 %v1977, %v2089
      %2091 = vmatmul.f32.gmra.mxu0 %v943
      %v2092 = vpop.f32.mrf.mxu0
      %v2093 = vadd.f32 %v1980, %v2092
      %2094 = vmatmul.f32.gmra.mxu0 %v942
      %v2095 = vpop.f32.mrf.mxu0
      %v2096 = vadd.f32 %v1983, %v2095
      %2097 = vmatmul.f32.gmra.mxu0 %v941
      %v2098 = vpop.f32.mrf.mxu0
      %v2099 = vadd.f32 %v1986, %v2098
      %2100 = vmatmul.f32.gmra.mxu0 %v940
      %v2101 = vpop.f32.mrf.mxu0
      %v2102 = vadd.f32 %v1989, %v2101
      %2103 = vmatmul.f32.gmra.mxu0 %v939
      %v2104 = vpop.f32.mrf.mxu0
      %v2105 = vadd.f32 %v1992, %v2104
      %2106 = vmatmul.f32.gmra.mxu0 %v938
      %v2107 = vpop.f32.mrf.mxu0
      %v2108 = vadd.f32 %v1995, %v2107
      %2109 = vmatmul.f32.gmra.mxu0 %v937
      %v2110 = vpop.f32.mrf.mxu0
      %v2111 = vadd.f32 %v1998, %v2110
      %2112 = vmatmul.f32.gmra.mxu0 %v936
      %v2113 = vpop.f32.mrf.mxu0
      %v2114 = vadd.f32 %v2001, %v2113
      %2115 = vmatmul.f32.gmra.mxu0 %v935
      %v2116 = vpop.f32.mrf.mxu0
      %v2117 = vadd.f32 %v2004, %v2116
      %2118 = vmatmul.f32.gmra.mxu0 %v934
      %v2119 = vpop.f32.mrf.mxu0
      %v2120 = vadd.f32 %v2007, %v2119
      %2121 = vmatmul.f32.gmra.mxu0 %v933
      %v2122 = vpop.f32.mrf.mxu0
      %v2123 = vadd.f32 %v2010, %v2122
      %2124 = vmatmul.f32.gmra.mxu0 %v932
      %v2125 = vpop.f32.mrf.mxu0
      %v2126 = vadd.f32 %v2013, %v2125
      %2127 = vmatmul.f32.gmra.mxu0 %v931
      %v2128 = vpop.f32.mrf.mxu0
      %v2129 = vadd.f32 %v2016, %v2128
      %2130 = vmatmul.f32.gmra.mxu0 %v970
      %v2131 = vpop.f32.mrf.mxu0
      %v2132 = vadd.f32 %v2019, %v2131
      %2133 = vdwg.mxu0
      %v2134 = vadd.f32 %v1651, %v2039
      %v2135 = vadd.f32 %v1654, %v2042
      %v2136 = vadd.f32 %v1657, %v2045
      %v2137 = vadd.f32 %v1660, %v2048
      %v2138 = vadd.f32 %v1663, %v2051
      %v2139 = vadd.f32 %v1666, %v2054
      %v2140 = vadd.f32 %v1669, %v2057
      %v2141 = vadd.f32 %v1672, %v2060
      %v2142 = vadd.f32 %v1675, %v2063
      %v2143 = vadd.f32 %v1678, %v2066
      %v2144 = vadd.f32 %v1681, %v2069
      %v2145 = vadd.f32 %v1684, %v2072
      %v2146 = vadd.f32 %v1687, %v2075
      %v2147 = vadd.f32 %v1690, %v2078
      %v2148 = vadd.f32 %v1693, %v2081
      %v2149 = vadd.f32 %v1696, %v2084
      %v2150 = vadd.f32 %v1699, %v2087
      %v2151 = vadd.f32 %v1702, %v2090
      %v2152 = vadd.f32 %v1705, %v2093
      %v2153 = vadd.f32 %v1708, %v2096
      %v2154 = vadd.f32 %v1711, %v2099
      %v2155 = vadd.f32 %v1714, %v2102
      %v2156 = vadd.f32 %v1717, %v2105
      %v2157 = vadd.f32 %v1720, %v2108
      %v2158 = vadd.f32 %v1723, %v2111
      %v2159 = vadd.f32 %v1726, %v2114
      %v2160 = vadd.f32 %v1729, %v2117
      %v2161 = vadd.f32 %v1732, %v2120
      %v2162 = vadd.f32 %v1735, %v2123
      %v2163 = vadd.f32 %v1738, %v2126
      %v2164 = vadd.f32 %v1741, %v2129
      %v2165 = vadd.f32 %v1744, %v2132
      %v2166 = vld [vmem:[%s4] sm:$0x1]
      %v2168 = vperm.slane %v2166, 0
      %v2170 = vadd.f32 %v2134, %v2168
      %v2171 = vadd.f32 %v2135, %v2168
      %v2172 = vadd.f32 %v2136, %v2168
      %v2173 = vadd.f32 %v2137, %v2168
      %v2174 = vadd.f32 %v2138, %v2168
      %v2175 = vadd.f32 %v2139, %v2168
      %v2176 = vadd.f32 %v2140, %v2168
      %v2177 = vadd.f32 %v2141, %v2168
      %v2178 = vadd.f32 %v2142, %v2168
      %v2179 = vadd.f32 %v2143, %v2168
      %v2180 = vadd.f32 %v2144, %v2168
      %v2181 = vadd.f32 %v2145, %v2168
      %v2182 = vadd.f32 %v2146, %v2168
      %v2183 = vadd.f32 %v2147, %v2168
      %v2184 = vadd.f32 %v2148, %v2168
      %v2185 = vadd.f32 %v2149, %v2168
      %v2186 = vadd.f32 %v2150, %v2168
      %v2187 = vadd.f32 %v2151, %v2168
      %v2188 = vadd.f32 %v2152, %v2168
      %v2189 = vadd.f32 %v2153, %v2168
      %v2190 = vadd.f32 %v2154, %v2168
      %v2191 = vadd.f32 %v2155, %v2168
      %v2192 = vadd.f32 %v2156, %v2168
      %v2193 = vadd.f32 %v2157, %v2168
      %v2194 = vadd.f32 %v2158, %v2168
      %v2195 = vadd.f32 %v2159, %v2168
      %v2196 = vadd.f32 %v2160, %v2168
      %v2197 = vadd.f32 %v2161, %v2168
      %v2198 = vadd.f32 %v2162, %v2168
      %v2199 = vadd.f32 %v2163, %v2168
      %v2200 = vadd.f32 %v2164, %v2168
      %v2201 = vadd.f32 %v2165, %v2168
      %v2202 = vmax.f32 %v2170, 0.0
      %v2203 = vmax.f32 %v2171, 0.0
      %v2204 = vmax.f32 %v2172, 0.0
      %v2205 = vmax.f32 %v2173, 0.0
      %v2206 = vmax.f32 %v2174, 0.0
      %v2207 = vmax.f32 %v2175, 0.0
      %v2208 = vmax.f32 %v2176, 0.0
      %v2209 = vmax.f32 %v2177, 0.0
      %v2210 = vmax.f32 %v2178, 0.0
      %v2211 = vmax.f32 %v2179, 0.0
      %v2212 = vmax.f32 %v2180, 0.0
      %v2213 = vmax.f32 %v2181, 0.0
      %v2214 = vmax.f32 %v2182, 0.0
      %v2215 = vmax.f32 %v2183, 0.0
      %v2216 = vmax.f32 %v2184, 0.0
      %v2217 = vmax.f32 %v2185, 0.0
      %v2218 = vmax.f32 %v2186, 0.0
      %v2219 = vmax.f32 %v2187, 0.0
      %v2220 = vmax.f32 %v2188, 0.0
      %v2221 = vmax.f32 %v2189, 0.0
      %v2222 = vmax.f32 %v2190, 0.0
      %v2223 = vmax.f32 %v2191, 0.0
      %v2224 = vmax.f32 %v2192, 0.0
      %v2225 = vmax.f32 %v2193, 0.0
      %v2226 = vmax.f32 %v2194, 0.0
      %v2227 = vmax.f32 %v2195, 0.0
      %v2228 = vmax.f32 %v2196, 0.0
      %v2229 = vmax.f32 %v2197, 0.0
      %v2230 = vmax.f32 %v2198, 0.0
      %v2231 = vmax.f32 %v2199, 0.0
      %v2232 = vmax.f32 %v2200, 0.0
      %v2233 = vmax.f32 %v2201, 0.0
      %v2234 = vld [vmem:[%s5] sm:$0xff]
      %v2235 = vld [vmem:[%s5 + $0x8] sm:$0xff]
      %v2236 = vld [vmem:[%s5 + $0x10] sm:$0xff]
      %v2237 = vld [vmem:[%s5 + $0x18] sm:$0xff]
      %v2238 = vld [vmem:[%s5 + $0x20] sm:$0xff]
      %v2239 = vld [vmem:[%s5 + $0x28] sm:$0xff]
      %v2240 = vld [vmem:[%s5 + $0x30] sm:$0xff]
      %v2241 = vld [vmem:[%s5 + $0x38] sm:$0xff]
      %v2242 = vld [vmem:[%s5 + $0x40] sm:$0xff]
      %v2243 = vld [vmem:[%s5 + $0x48] sm:$0xff]
      %v2244 = vld [vmem:[%s5 + $0x50] sm:$0xff]
      %v2245 = vld [vmem:[%s5 + $0x58] sm:$0xff]
      %v2246 = vld [vmem:[%s5 + $0x60] sm:$0xff]
      %v2247 = vld [vmem:[%s5 + $0x68] sm:$0xff]
      %v2248 = vld [vmem:[%s5 + $0x70] sm:$0xff]
      %v2249 = vld [vmem:[%s5 + $0x78] sm:$0xff]
      %v2250 = vld [vmem:[%s6] sm:$0x1]
      %v2252 = vperm.slane %v2250, 0
      %2254 = vmatpush.msra.mxu0 %v2249
      %2255 = vmatpush.msra.mxu0 %v2248
      %2256 = vmatpush.msra.mxu0 %v2247
      %2257 = vmatpush.msra.mxu0 %v2246
      %2258 = vmatpush.msra.mxu0 %v2245
      %2259 = vmatpush.msra.mxu0 %v2244
      %2260 = vmatpush.msra.mxu0 %v2243
      %2261 = vmatpush.msra.mxu0 %v2242
      %2262 = vmatpush.msra.mxu0 %v2241
      %2263 = vmatpush.msra.mxu0 %v2240
      %2264 = vmatpush.msra.mxu0 %v2239
      %2265 = vmatpush.msra.mxu0 %v2238
      %2266 = vmatpush.msra.mxu0 %v2237
      %2267 = vmatpush.msra.mxu0 %v2236
      %2268 = vmatpush.msra.mxu0 %v2235
      %2269 = vmatpush.msra.mxu0 %v2234
      %2270 = vmatmul.f32.gmra.mxu0 %v2202
      %v2271 = vpop.f32.mrf.mxu0
      %v2272 = vadd.f32 %v2252, %v2271
      %2273 = vmatmul.f32.gmra.mxu0 %v2203
      %v2274 = vpop.f32.mrf.mxu0
      %v2275 = vadd.f32 %v2252, %v2274
      %2276 = vmatmul.f32.gmra.mxu0 %v2204
      %v2277 = vpop.f32.mrf.mxu0
      %2278 = vmatmul.f32.gmra.mxu0 %v2205
      %v2279 = vpop.f32.mrf.mxu0
      %2280 = vmatmul.f32.gmra.mxu0 %v2206
      %v2281 = vpop.f32.mrf.mxu0
      %v2282 = vadd.f32 %v2252, %v2281
      %2283 = vmatmul.f32.gmra.mxu0 %v2207
      %v2284 = vpop.f32.mrf.mxu0
      %v2285 = vadd.f32 %v2252, %v2284
      %2286 = vmatmul.f32.gmra.mxu0 %v2208
      %v2287 = vpop.f32.mrf.mxu0
      %2288 = vmatmul.f32.gmra.mxu0 %v2209
      %v2289 = vpop.f32.mrf.mxu0
      %2290 = vmatmul.f32.gmra.mxu0 %v2210
      %v2291 = vpop.f32.mrf.mxu0
      %v2292 = vadd.f32 %v2252, %v2291
      %2293 = vmatmul.f32.gmra.mxu0 %v2211
      %v2294 = vpop.f32.mrf.mxu0
      %v2295 = vadd.f32 %v2252, %v2294
      %2296 = vmatmul.f32.gmra.mxu0 %v2212
      %v2297 = vpop.f32.mrf.mxu0
      %2298 = vmatmul.f32.gmra.mxu0 %v2213
      %v2299 = vpop.f32.mrf.mxu0
      %2300 = vmatmul.f32.gmra.mxu0 %v2214
      %v2301 = vpop.f32.mrf.mxu0
      %v2302 = vadd.f32 %v2252, %v2301
      %2303 = vmatmul.f32.gmra.mxu0 %v2215
      %v2304 = vpop.f32.mrf.mxu0
      %v2305 = vadd.f32 %v2252, %v2304
      %2306 = vmatmul.f32.gmra.mxu0 %v2216
      %v2307 = vpop.f32.mrf.mxu0
      %2308 = vmatmul.f32.gmra.mxu0 %v2217
      %v2309 = vpop.f32.mrf.mxu0
      %2310 = vmatmul.f32.gmra.mxu0 %v2218
      %v2311 = vpop.f32.mrf.mxu0
      %v2312 = vadd.f32 %v2252, %v2311
      %2313 = vmatmul.f32.gmra.mxu0 %v2219
      %v2314 = vpop.f32.mrf.mxu0
      %v2315 = vadd.f32 %v2252, %v2314
      %2316 = vmatmul.f32.gmra.mxu0 %v2220
      %v2317 = vpop.f32.mrf.mxu0
      %2318 = vmatmul.f32.gmra.mxu0 %v2221
      %v2319 = vpop.f32.mrf.mxu0
      %2320 = vmatmul.f32.gmra.mxu0 %v2222
      %v2321 = vpop.f32.mrf.mxu0
      %v2322 = vadd.f32 %v2252, %v2321
      %2323 = vmatmul.f32.gmra.mxu0 %v2223
      %v2324 = vpop.f32.mrf.mxu0
      %v2325 = vadd.f32 %v2252, %v2324
      %2326 = vmatmul.f32.gmra.mxu0 %v2224
      %v2327 = vpop.f32.mrf.mxu0
      %2328 = vmatmul.f32.gmra.mxu0 %v2225
      %v2329 = vpop.f32.mrf.mxu0
      %2330 = vmatmul.f32.gmra.mxu0 %v2226
      %v2331 = vpop.f32.mrf.mxu0
      %v2332 = vadd.f32 %v2252, %v2331
      %2333 = vmatmul.f32.gmra.mxu0 %v2227
      %v2334 = vpop.f32.mrf.mxu0
      %v2335 = vadd.f32 %v2252, %v2334
      %2336 = vmatmul.f32.gmra.mxu0 %v2228
      %v2337 = vpop.f32.mrf.mxu0
      %2338 = vmatmul.f32.gmra.mxu0 %v2229
      %v2339 = vpop.f32.mrf.mxu0
      %2340 = vmatmul.f32.gmra.mxu0 %v2230
      %v2341 = vpop.f32.mrf.mxu0
      %v2342 = vadd.f32 %v2252, %v2341
      %2343 = vmatmul.f32.gmra.mxu0 %v2231
      %v2344 = vpop.f32.mrf.mxu0
      %v2345 = vadd.f32 %v2252, %v2344
      %2346 = vmatmul.f32.gmra.mxu0 %v2232
      %v2347 = vpop.f32.mrf.mxu0
      %2348 = vmatmul.f32.gmra.mxu0 %v2233
      %v2349 = vpop.f32.mrf.mxu0
      %2350 = vdwg.mxu0
      %2351 = vst [vmem:[%s316] sm:$0xff] %v2272
      %2352 = vst [vmem:[%s316 + $0x8] sm:$0xff] %v2275
      %2353 = vst [vmem:[%s316 + $0x10] sm:$0xff] %v2282
      %2354 = vst [vmem:[%s316 + $0x18] sm:$0xff] %v2285
      %2355 = vst [vmem:[%s316 + $0x20] sm:$0xff] %v2292
      %2356 = vst [vmem:[%s316 + $0x28] sm:$0xff] %v2295
      %2357 = vst [vmem:[%s316 + $0x30] sm:$0xff] %v2302
      %2358 = vst [vmem:[%s316 + $0x38] sm:$0xff] %v2305
      %2359 = vst [vmem:[%s316 + $0x40] sm:$0xff] %v2312
      %2360 = vst [vmem:[%s316 + $0x48] sm:$0xff] %v2315
      %2361 = vst [vmem:[%s316 + $0x50] sm:$0xff] %v2322
      %2362 = vst [vmem:[%s316 + $0x58] sm:$0xff] %v2325
      %2363 = vst [vmem:[%s316 + $0x60] sm:$0xff] %v2332
      %2364 = vst [vmem:[%s316 + $0x68] sm:$0xff] %v2335
      %2365 = vst [vmem:[%s316 + $0x70] sm:$0xff] %v2342
      %2366 = vst [vmem:[%s316 + $0x78] sm:$0xff] %v2345
      %s2367 = smul.u32 8, %s23
      %p2368 = scmp.lt.s32.totalorder %s22, 1
      %s2369 = scalar_select %p2368, %s22, 1
      %p2370 = scmp.lt.s32.totalorder %s2367, 15
      %s2371 = scalar_select %p2370, %s2367, 15
      %s2372 = smul.addr %s2371, 2
      %s2373 = smul.addr %s2369, 32
      %s2374 = sadd.s32 %s2372, %s2373
      %s2375 = smul.addr %s2374, 8
      %s2376 = scalar_lea.vmem %s7, %s2375
      // Predicated region
      $region49: #{_lambda_.1} parent=47 // pred_check
        %p2377 = pneg %p204
      $region50: #{_lambda_.1} parent=47 // pred_check_branch
        %2379 = sbr.rel (%p2377) target = $region52
      $region51: #{_lambda_.1} parent=47 // pred_region
        %s2380 = smul.u32 8, %s23
      $region52: #{_lambda_.1} parent=47 // pred_fallthru
        _
    $region48: #{_lambda_.1} parent=5 // pred_fallthru
      _
    %p2381 = scmp.le.s32.totalorder 2, %s13
    // Predicated region
    $region53: #{_lambda_.1} parent=5 // pred_check
      %p2382 = pneg %p2381
    $region54: #{_lambda_.1} parent=5 // pred_check_branch
      %2384 = sbr.rel (%p2382) target = $region56
    $region55: #{_lambda_.1} parent=5 // pred_region
      %s2385 = ssub.s32 %s13, 2
      // Predicated region
      $region57: #{_lambda_.1} parent=55 // pred_check
        %p2386 = pneg %p210
      $region58: #{_lambda_.1} parent=55 // pred_check_branch
        %2388 = sbr.rel (%p2386) target = $region60
      $region59: #{_lambda_.1} parent=55 // pred_region
        %s2389 = smul.u32 8, %s25
        %p2390 = scmp.lt.s32.totalorder %s24, 1
        %s2391 = scalar_select %p2390, %s24, 1
        %p2392 = scmp.lt.s32.totalorder %s2389, 15
        %s2393 = scalar_select %p2392, %s2389, 15
        %s2394 = smul.addr %s2393, 2
        %s2395 = smul.addr %s2391, 32
        %s2396 = sadd.s32 %s2394, %s2395
        %s2397 = smul.addr %s2396, 8
        %s2398 = scalar_lea.vmem %s7, %s2397
      $region60: #{_lambda_.1} parent=55 // pred_fallthru
        _
    $region56: #{_lambda_.1} parent=5 // pred_fallthru
      _
  $region6: #{_lambda_.1} parent=0 // loop_footer
    %s17 = sadd.s32 1, %s13
  $region7: #{_lambda_.1} parent=0 // loop_footer_branch
    %12 = sbr.rel target = $region3
  $region8: #{_lambda_.1} parent=0 // loop_exit
    _

</llo_original>
